<compile_context>
chip_gen: v7x
topology: tpu7x:2x2x1
jax: 0.10.0
libtpu: 0.0.40
codegen_flags: <defaults>
</compile_context>

<pallas_src>
import functools

import jax
import jax.numpy as jnp
from jax.experimental import pallas as pl
from jax.experimental.pallas import tpu as pltpu

BN_EPS = 1e-5


def make_divisible(v, divisor=8, min_value=None):
    min_value = min_value or divisor
    new_v = max(min_value, int(v + divisor / 2) // divisor * divisor)
    if new_v < 0.9 * v:
        new_v += divisor
    return new_v


# ----------------------------- fused Pallas kernel ---------------------------

def _pyramid_kernel(x_ref, w1_ref, b1_ref, wdw_ref, b2_ref, w3_ref, b3_ref,
                    o_ref, y1p_ref, *, H, W, bp, residual_specs):
    """Whole ReducePyramid (all 3 fused InvertedResidual branches) for bp images.

    x_ref   : (bp, H*W, cin)      channels-last, flattened spatial, f32
    w1_ref  : (cin, cmid)         bf16, block-diag (branches+groups), BN1 folded
    wdw_ref : (9, cmid)           f32 depthwise taps (kh*3+kw), BN2 folded
    w3_ref  : (cmid, cout)        bf16, block-diag, BN3 folded (cout padded to 8)
    b*_ref  : (1, c)              f32 folded BN biases
    o_ref   : (bp, cout, H*W)     NCHW-flat, lane-dense (last dim = H*W)
    y1p_ref : (bp, H+2, W+2, cmid) zero-bordered halo scratch for the depthwise
    """
    HW = H * W
    cin = x_ref.shape[2]
    cmid = w1_ref.shape[1]
    cout = w3_ref.shape[1]
    M = bp * HW

    # ---- stage 1: fused grouped 1x1 expand (block-diag matmul) + BN1 + ReLU
    x2d = x_ref[...].reshape(M, cin)                              # (M, cin) f32
    y1 = jnp.dot(x2d.astype(jnp.bfloat16), w1_ref[...],
                 preferred_element_type=jnp.float32)
    y1 = jnp.maximum(y1 + b1_ref[...], 0.0)                       # (M, cmid)

    # ---- scatter into the zero-bordered halo scratch -----------------------
    # 4 thin border stores + ONE interior store per step.
    zrow = jnp.zeros((bp, 1, W + 2, cmid), jnp.float32)
    zcol = jnp.zeros((bp, H, 1, cmid), jnp.float32)
    y1p_ref[:, 0:1, :, :] = zrow
    y1p_ref[:, H + 1:H + 2, :, :] = zrow
    y1p_ref[:, 1:H + 1, 0:1, :] = zcol
    y1p_ref[:, 1:H + 1, W + 1:W + 2, :] = zcol
    y1p_ref[:, 1:H + 1, 1:W + 1, :] = y1.reshape(bp, H, W, cmid)

    # ---- stage 2: depthwise 3x3 (dense stride 1) + BN2 + ReLU --------------
    # 9 whole-plane FMAs; tap weights hoisted out of the loop.
    wdw = wdw_ref[...]                                            # (9, cmid)
    acc = jnp.zeros((bp, H, W, cmid), jnp.float32)
    for kh in range(3):
        for kw in range(3):
            acc = acc + y1p_ref[:, kh:kh + H, kw:kw + W, :] * wdw[kh * 3 + kw]
    y2 = jnp.maximum(acc + b2_ref[...], 0.0).reshape(M, cmid)

    # ---- stage 3: fused grouped 1x1 linear (block-diag) + BN3 (+ residual) -
    z = jnp.dot(y2.astype(jnp.bfloat16), w3_ref[...],
                preferred_element_type=jnp.float32)
    z = z + b3_ref[...]
    if residual_specs:                       # compile-time channel map, f32 add
        parts, cur = [], 0
        for (x_off, z_off, n) in residual_specs:
            if z_off > cur:
                parts.append(jnp.zeros((M, z_off - cur), jnp.float32))
            parts.append(x2d[:, x_off:x_off + n])
            cur = z_off + n
        if cur < cout:
            parts.append(jnp.zeros((M, cout - cur), jnp.float32))
        z = z + jnp.concatenate(parts, axis=1)

    # ---- lane-dense NCHW-flat store: (HW, cout) -> (cout, HW) per image ----
    for i in range(bp):
        o_ref[i] = z[i * HW:(i + 1) * HW, :].T


# ------------------------------ module apply ----------------------------------

def inverted_reorg(x, s):
    # exact replica of InvertedReorg.forward (pure layout glue, left to XLA)
    b, c_tot, h, w = x.shape
    c = c_tot // (s * s)
    x = x.reshape(b, s * s, c, h, w).transpose(0, 2, 1, 3, 4)
    x = x.reshape(b, c, s, s, h, w).transpose(0, 1, 2, 4, 3, 5)
    return x.reshape(b, c, s * h, s * w)


def apply_reduce_pyramid(p, x_nchw):
    bsz, c_tot, H, W = x_nchw.shape
    HW = H * W
    cin = p['W1'].shape[0]
    cmid = p['W1'].shape[1]
    cout_pad = p['W3'].shape[1]
    if c_tot != cin:
        raise ValueError(f"expected {cin} input channels, got {c_tot}")

    # ONE layout change for the whole pyramid: NCHW -> (b, H*W, C)
    x_cl = jnp.transpose(x_nchw, (0, 2, 3, 1)).reshape(bsz, HW, c_tot)

    grid_b = 2 if (bsz >= 2 and bsz % 2 == 0) else 1   # 2 parallel steps for v7x
    bp = bsz // grid_b                                 # rest of batch folded into M

    kernel = functools.partial(_pyramid_kernel, H=H, W=W, bp=bp,
                               residual_specs=p['residual_specs'])
    y = pl.pallas_call(
        kernel,
        out_shape=jax.ShapeDtypeStruct((bsz, cout_pad, HW), jnp.float32),
        grid=(grid_b,),
        in_specs=[
            pl.BlockSpec((bp, HW, cin), lambda i: (i, 0, 0)),
            pl.BlockSpec((cin, cmid), lambda i: (0, 0)),
            pl.BlockSpec((1, cmid), lambda i: (0, 0)),
            pl.BlockSpec((9, cmid), lambda i: (0, 0)),
            pl.BlockSpec((1, cmid), lambda i: (0, 0)),
            pl.BlockSpec((cmid, cout_pad), lambda i: (0, 0)),
            pl.BlockSpec((1, cout_pad), lambda i: (0, 0)),
        ],
        out_specs=pl.BlockSpec((bp, cout_pad, HW), lambda i: (i, 0, 0)),
        scratch_shapes=[pltpu.VMEM((bp, H + 2, W + 2, cmid), jnp.float32)],
        compiler_params=pltpu.CompilerParams(
            dimension_semantics=("parallel",)),
    )(x_cl, p['W1'], p['B1'], p['WDW'], p['B2'], p['W3'], p['B3'])

    # XLA layout glue: split branches (already NCHW-flat), apply each branch's
    # stride subsample (exact: 1x1 conv_pwl commutes with subsampling), reorg,
    # and concat along channels.
    y = y.reshape(bsz, cout_pad, H, W)
    outs, off = [], 0
    for br in p['branches']:
        s = br['stride']
        outs.append(y[:, off:off + br['cout'], ::s, ::s])
        off += br['cout']
    x1 = inverted_reorg(outs[0], p['slice1'])
    return jnp.concatenate([x1, outs[1], outs[2]], axis=1)


# --------------------------- parameter construction ---------------------------

def _fold_bn(key, c):
    kg, kb, km, kv = jax.random.split(key, 4)
    gamma = jax.random.uniform(kg, (c,), minval=0.5, maxval=1.5)
    beta = jax.random.normal(kb, (c,)) * 0.1
    mean = jax.random.normal(km, (c,)) * 0.1
    var = jax.random.uniform(kv, (c,), minval=0.5, maxval=1.5)
    scale = gamma / jnp.sqrt(var + BN_EPS)
    bias = beta - mean * scale
    return scale.astype(jnp.float32), bias.astype(jnp.float32)


def _block_diag(mats):
    rows = sum(m.shape[0] for m in mats)
    cols = sum(m.shape[1] for m in mats)
    out = jnp.zeros((rows, cols), jnp.float32)
    r = c = 0
    for m in mats:
        out = out.at[r:r + m.shape[0], c:c + m.shape[1]].set(m)
        r += m.shape[0]
        c += m.shape[1]
    return out


def init_inverted_residual(key, in_chs, out_chs, stride, exp_ratio, exp_slice):
    mid_chs = make_divisible(in_chs * exp_ratio)
    cin, cmid, cout = in_chs * exp_slice, mid_chs * exp_slice, out_chs * exp_slice
    ks = jax.random.split(key, 6)

    s1, b1 = _fold_bn(ks[0], cmid)
    s2, b2 = _fold_bn(ks[1], cmid)
    s3, b3 = _fold_bn(ks[2], cout)

    # grouped 1x1 expand conv -> block-diag matrix, BN1 scale folded into cols
    w_pw_g = jax.random.normal(ks[3], (exp_slice, in_chs, mid_chs)) * 0.2
    w1 = _block_diag([w_pw_g[g] for g in range(exp_slice)]) * s1[None, :]

    # depthwise 3x3 taps in (kh*3+kw, channel) order, BN2 scale folded
    w_dw = jax.random.normal(ks[4], (cmid, 3, 3)) * 0.2
    wdw = jnp.transpose(w_dw, (1, 2, 0)).reshape(9, cmid) * s2[None, :]

    # grouped 1x1 linear conv -> block-diag, BN3 scale folded
    w_pwl_g = jax.random.normal(ks[5], (exp_slice, mid_chs, out_chs)) * 0.2
    w3 = _block_diag([w_pwl_g[g] for g in range(exp_slice)]) * s3[None, :]

    has_residual = (in_chs == out_chs) and stride == 1
    return dict(w1=w1.astype(jnp.float32), b1=b1[None, :],
                wdw=wdw.astype(jnp.float32), b2=b2[None, :],
                w3=w3.astype(jnp.float32), b3=b3[None, :],
                stride=stride, has_residual=has_residual,
                cin=cin, cmid=cmid, cout=cout)


def init_reduce_pyramid(key, in_chs, out_chs, stride, exp_ratio, slc):
    k1, k2, k3 = jax.random.split(key, 3)
    chs = (slc[0] ** 2, slc[1] ** 2, slc[2] ** 2)
    branches = [
        init_inverted_residual(k1, in_chs, out_chs, stride[0], exp_ratio, chs[0]),
        init_inverted_residual(k2, in_chs, out_chs // 4, stride[1], exp_ratio // 2, chs[1]),
        init_inverted_residual(k3, in_chs, out_chs // 16, stride[2], exp_ratio // 2, chs[2]),
    ]

    # fuse the three branches into ONE block-diagonal operand set
    W1 = _block_diag([br['w1'] for br in branches])
    W3 = _block_diag([br['w3'] for br in branches])
    WDW = jnp.concatenate([br['wdw'] for br in branches], axis=1)
    B1 = jnp.concatenate([br['b1'] for br in branches], axis=1)
    B2 = jnp.concatenate([br['b2'] for br in branches], axis=1)
    B3 = jnp.concatenate([br['b3'] for br in branches], axis=1)

    residual_specs, x_off, z_off = [], 0, 0
    for br in branches:
        if br['has_residual']:
            residual_specs.append((x_off, z_off, br['cin']))
        x_off += br['cin']
        z_off += br['cout']

    cout_total = z_off
    cout_pad = ((cout_total + 7) // 8) * 8          # sublane-align transposed store
    if cout_pad > cout_total:
        W3 = jnp.pad(W3, ((0, 0), (0, cout_pad - cout_total)))
        B3 = jnp.pad(B3, ((0, 0), (0, cout_pad - cout_total)))

    return dict(branches=branches, chs=chs, slice1=slc[0],
                residual_specs=tuple(residual_specs),
                W1=W1.astype(jnp.bfloat16), B1=B1.astype(jnp.float32),
                WDW=WDW.astype(jnp.float32), B2=B2.astype(jnp.float32),
                W3=W3.astype(jnp.bfloat16), B3=B3.astype(jnp.float32))


# ------------------------------ pure-JAX reference -----------------------------

def _ref_inverted_residual(br, x_nchw):
    """Plain-JAX reference for one InvertedResidual (same bf16 matmul policy)."""
    b, cin, H, W = x_nchw.shape
    s = br['stride']
    x = jnp.transpose(x_nchw, (0, 2, 3, 1))                          # (b,H,W,cin)
    y1 = jnp.dot(x.astype(jnp.bfloat16), br['w1'].astype(jnp.bfloat16),
                 preferred_element_type=jnp.float32) + br['b1'][0]
    y1 = jnp.maximum(y1, 0.0)
    y1p = jnp.pad(y1, ((0, 0), (1, 1), (1, 1), (0, 0)))
    acc = jnp.zeros_like(y1)
    for kh in range(3):
        for kw in range(3):
            acc = acc + y1p[:, kh:kh + H, kw:kw + W, :] * br['wdw'][kh * 3 + kw]
    y2 = jnp.maximum(acc + br['b2'][0], 0.0)
    y2 = y2[:, ::s, ::s, :]                                          # conv_dw stride
    z = jnp.dot(y2.astype(jnp.bfloat16), br['w3'].astype(jnp.bfloat16),
                preferred_element_type=jnp.float32) + br['b3'][0]
    if br['has_residual']:
        z = z + x
    return jnp.transpose(z, (0, 3, 1, 2))                            # NCHW


def _ref_reduce_pyramid(p, x):
    chs1, chs2, chs3 = p['chs']
    ch = x.shape[1] // (chs1 + chs2 + chs3)
    x1 = _ref_inverted_residual(p['branches'][0], x[:, :chs1 * ch])
    x1 = inverted_reorg(x1, p['slice1'])
    x2 = _ref_inverted_residual(p['branches'][1], x[:, chs1 * ch:(chs1 + chs2) * ch])
    x3 = _ref_inverted_residual(p['branches'][2], x[:, (chs1 + chs2) * ch:])
    return jnp.concatenate([x1, x2, x3], axis=1)


# ----------------------------------- main --------------------------------------

if __name__ == "__main__":
    key = jax.random.PRNGKey(0)
    kp, kx = jax.random.split(key)

    in_chs, out_chs = 4, 16
    stride = [2, 1, 1]
    slc = [2, 1, 1]
    exp_ratio = 2
    batch, height, width = 2, 16, 16

    chs_total = slc[0] ** 2 + slc[1] ** 2 + slc[2] ** 2       # = 6
    x = jax.random.normal(kx, (batch, in_chs * chs_total, height, width), jnp.float32)

    params = init_reduce_pyramid(kp, in_chs, out_chs, stride, exp_ratio, slc)
    fwd = jax.jit(lambda xx: apply_reduce_pyramid(params, xx))
    out = jax.block_until_ready(fwd(x))

    expected_c = out_chs + out_chs // 4 + out_chs // 16       # 16 + 4 + 1 = 21
    expected_hw = height * slc[0] // stride[0]                # 16
    assert out.shape == (batch, expected_c, expected_hw, expected_hw), out.shape
    assert bool(jnp.all(jnp.isfinite(out)))

    ref = jax.block_until_ready(jax.jit(lambda xx: _ref_reduce_pyramid(params, xx))(x))
    max_err = float(jnp.max(jnp.abs(out - ref)))
    assert max_err < 1e-2, f"max abs error vs reference: {max_err}"

    print("KERNEL_OK")
</pallas_src>

<mosaic_0001>
module attributes {stable_mosaic.version = 11 : i64} {
  func.func @_pyramid_kernel(%arg0: i32, %arg1: memref<1x256x24xf32, #tpu.memory_space<vmem>>, %arg2: memref<24x48xbf16, #tpu.memory_space<vmem>>, %arg3: memref<1x48xf32, #tpu.memory_space<vmem>>, %arg4: memref<9x48xf32, #tpu.memory_space<vmem>>, %arg5: memref<1x48xf32, #tpu.memory_space<vmem>>, %arg6: memref<48x72xbf16, #tpu.memory_space<vmem>>, %arg7: memref<1x72xf32, #tpu.memory_space<vmem>>, %arg8: memref<1x72x256xf32, #tpu.memory_space<vmem>>, %arg9: memref<1x18x18x48xf32, #tpu.memory_space<vmem>>) attributes {dimension_semantics = [#tpu.dimension_semantics<parallel>], iteration_bounds = array<i64: 2>, scalar_prefetch = 0 : i64, scratch_operands = 1 : i64, tpu.core_type = #tpu.core_type<tc>, window_params = [{transform_indices = @transform_0, window_bounds = array<i64: 1, 256, 24>}, {pipeline_mode = #tpu.pipeline_mode<synchronous>, transform_indices = @transform_1, window_bounds = array<i64: 24, 48>}, {pipeline_mode = #tpu.pipeline_mode<synchronous>, transform_indices = @transform_2, window_bounds = array<i64: 1, 48>}, {pipeline_mode = #tpu.pipeline_mode<synchronous>, transform_indices = @transform_3, window_bounds = array<i64: 9, 48>}, {pipeline_mode = #tpu.pipeline_mode<synchronous>, transform_indices = @transform_4, window_bounds = array<i64: 1, 48>}, {pipeline_mode = #tpu.pipeline_mode<synchronous>, transform_indices = @transform_5, window_bounds = array<i64: 48, 72>}, {pipeline_mode = #tpu.pipeline_mode<synchronous>, transform_indices = @transform_6, window_bounds = array<i64: 1, 72>}, {transform_indices = @transform_7, window_bounds = array<i64: 1, 72, 256>}]} {
    %c0 = arith.constant 0 : index
    %c0_0 = arith.constant 0 : index
    %c0_1 = arith.constant 0 : index
    %0 = vector.load %arg1[%c0, %c0_0, %c0_1] : memref<1x256x24xf32, #tpu.memory_space<vmem>>, vector<1x256x24xf32>
    %1 = vector.shape_cast %0 : vector<1x256x24xf32> to vector<256x24xf32>
    %2 = arith.truncf %1 : vector<256x24xf32> to vector<256x24xbf16>
    %c0_2 = arith.constant 0 : index
    %c0_3 = arith.constant 0 : index
    %3 = vector.load %arg2[%c0_2, %c0_3] : memref<24x48xbf16, #tpu.memory_space<vmem>>, vector<24x48xbf16>
    %cst = arith.constant dense<0.000000e+00> : vector<256x48xf32>
    %4 = tpu.matmul %2, %3, %cst {dimension_numbers = #tpu.dot_dimension_numbers<[1], [0], [0], [1], [0, 0, 1, 1], [], []>} : vector<256x24xbf16>, vector<24x48xbf16>, vector<256x48xf32> -> vector<256x48xf32>
    %c0_4 = arith.constant 0 : index
    %c0_5 = arith.constant 0 : index
    %5 = vector.load %arg3[%c0_4, %c0_5] : memref<1x48xf32, #tpu.memory_space<vmem>>, vector<1x48xf32>
    %6 = vector.broadcast %5 : vector<1x48xf32> to vector<256x48xf32>
    %7 = arith.addf %4, %6 : vector<256x48xf32>
    %cst_6 = arith.constant 0.000000e+00 : f32
    %8 = vector.broadcast %cst_6 : f32 to vector<256x48xf32>
    %9 = arith.maximumf %7, %8 : vector<256x48xf32>
    %cst_7 = arith.constant 0.000000e+00 : f32
    %10 = vector.broadcast %cst_7 : f32 to vector<1x1x18x48xf32>
    %cst_8 = arith.constant 0.000000e+00 : f32
    %11 = vector.broadcast %cst_8 : f32 to vector<1x16x1x48xf32>
    %c0_9 = arith.constant 0 : index
    %c0_10 = arith.constant 0 : index
    %c0_11 = arith.constant 0 : index
    %c0_12 = arith.constant 0 : index
    %12 = vector.load %arg9[%c0_9, %c0_10, %c0_11, %c0_12] : memref<1x18x18x48xf32, #tpu.memory_space<vmem>>, vector<1x1x18x48xf32>
    tpu.vector_store %arg9[%c0_9, %c0_10, %c0_11, %c0_12], %10 {strides = array<i32>} : memref<1x18x18x48xf32, #tpu.memory_space<vmem>>, vector<1x1x18x48xf32>,
    %c0_13 = arith.constant 0 : index
    %c17 = arith.constant 17 : index
    %c0_14 = arith.constant 0 : index
    %c0_15 = arith.constant 0 : index
    %13 = vector.load %arg9[%c0_13, %c17, %c0_14, %c0_15] : memref<1x18x18x48xf32, #tpu.memory_space<vmem>>, vector<1x1x18x48xf32>
    tpu.vector_store %arg9[%c0_13, %c17, %c0_14, %c0_15], %10 {strides = array<i32>} : memref<1x18x18x48xf32, #tpu.memory_space<vmem>>, vector<1x1x18x48xf32>,
    %c0_16 = arith.constant 0 : index
    %c1 = arith.constant 1 : index
    %c0_17 = arith.constant 0 : index
    %c0_18 = arith.constant 0 : index
    %14 = vector.load %arg9[%c0_16, %c1, %c0_17, %c0_18] : memref<1x18x18x48xf32, #tpu.memory_space<vmem>>, vector<1x16x1x48xf32>
    tpu.vector_store %arg9[%c0_16, %c1, %c0_17, %c0_18], %11 {strides = array<i32>} : memref<1x18x18x48xf32, #tpu.memory_space<vmem>>, vector<1x16x1x48xf32>,
    %c0_19 = arith.constant 0 : index
    %c1_20 = arith.constant 1 : index
    %c17_21 = arith.constant 17 : index
    %c0_22 = arith.constant 0 : index
    %15 = vector.load %arg9[%c0_19, %c1_20, %c17_21, %c0_22] : memref<1x18x18x48xf32, #tpu.memory_space<vmem>>, vector<1x16x1x48xf32>
    tpu.vector_store %arg9[%c0_19, %c1_20, %c17_21, %c0_22], %11 {strides = array<i32>} : memref<1x18x18x48xf32, #tpu.memory_space<vmem>>, vector<1x16x1x48xf32>,
    %16 = vector.shape_cast %9 : vector<256x48xf32> to vector<1x16x16x48xf32>
    %c0_23 = arith.constant 0 : index
    %c1_24 = arith.constant 1 : index
    %c1_25 = arith.constant 1 : index
    %c0_26 = arith.constant 0 : index
    %17 = vector.load %arg9[%c0_23, %c1_24, %c1_25, %c0_26] : memref<1x18x18x48xf32, #tpu.memory_space<vmem>>, vector<1x16x16x48xf32>
    tpu.vector_store %arg9[%c0_23, %c1_24, %c1_25, %c0_26], %16 {strides = array<i32>} : memref<1x18x18x48xf32, #tpu.memory_space<vmem>>, vector<1x16x16x48xf32>,
    %c0_27 = arith.constant 0 : index
    %c0_28 = arith.constant 0 : index
    %18 = vector.load %arg4[%c0_27, %c0_28] : memref<9x48xf32, #tpu.memory_space<vmem>>, vector<9x48xf32>
    %cst_29 = arith.constant 0.000000e+00 : f32
    %19 = vector.broadcast %cst_29 : f32 to vector<1x16x16x48xf32>
    %c0_30 = arith.constant 0 : index
    %c0_31 = arith.constant 0 : index
    %c0_32 = arith.constant 0 : index
    %c0_33 = arith.constant 0 : index
    %20 = vector.load %arg9[%c0_30, %c0_31, %c0_32, %c0_33] : memref<1x18x18x48xf32, #tpu.memory_space<vmem>>, vector<1x16x16x48xf32>
    %21 = vector.extract_strided_slice %18 {offsets = [0, 0], sizes = [1, 48], strides = [1, 1]} : vector<9x48xf32> to vector<1x48xf32>
    %22 = vector.shape_cast %21 : vector<1x48xf32> to vector<48xf32>
    %23 = vector.shape_cast %22 : vector<48xf32> to vector<1x1x1x48xf32>
    %24 = vector.broadcast %23 : vector<1x1x1x48xf32> to vector<1x16x16x48xf32>
    %25 = arith.mulf %20, %24 : vector<1x16x16x48xf32>
    %26 = arith.addf %19, %25 : vector<1x16x16x48xf32>
    %c0_34 = arith.constant 0 : index
    %c0_35 = arith.constant 0 : index
    %c1_36 = arith.constant 1 : index
    %c0_37 = arith.constant 0 : index
    %27 = vector.load %arg9[%c0_34, %c0_35, %c1_36, %c0_37] : memref<1x18x18x48xf32, #tpu.memory_space<vmem>>, vector<1x16x16x48xf32>
    %28 = vector.extract_strided_slice %18 {offsets = [1, 0], sizes = [1, 48], strides = [1, 1]} : vector<9x48xf32> to vector<1x48xf32>
    %29 = vector.shape_cast %28 : vector<1x48xf32> to vector<48xf32>
    %30 = vector.shape_cast %29 : vector<48xf32> to vector<1x1x1x48xf32>
    %31 = vector.broadcast %30 : vector<1x1x1x48xf32> to vector<1x16x16x48xf32>
    %32 = arith.mulf %27, %31 : vector<1x16x16x48xf32>
    %33 = arith.addf %26, %32 : vector<1x16x16x48xf32>
    %c0_38 = arith.constant 0 : index
    %c0_39 = arith.constant 0 : index
    %c2 = arith.constant 2 : index
    %c0_40 = arith.constant 0 : index
    %34 = vector.load %arg9[%c0_38, %c0_39, %c2, %c0_40] : memref<1x18x18x48xf32, #tpu.memory_space<vmem>>, vector<1x16x16x48xf32>
    %35 = vector.extract_strided_slice %18 {offsets = [2, 0], sizes = [1, 48], strides = [1, 1]} : vector<9x48xf32> to vector<1x48xf32>
    %36 = vector.shape_cast %35 : vector<1x48xf32> to vector<48xf32>
    %37 = vector.shape_cast %36 : vector<48xf32> to vector<1x1x1x48xf32>
    %38 = vector.broadcast %37 : vector<1x1x1x48xf32> to vector<1x16x16x48xf32>
    %39 = arith.mulf %34, %38 : vector<1x16x16x48xf32>
    %40 = arith.addf %33, %39 : vector<1x16x16x48xf32>
    %c0_41 = arith.constant 0 : index
    %c1_42 = arith.constant 1 : index
    %c0_43 = arith.constant 0 : index
    %c0_44 = arith.constant 0 : index
    %41 = vector.load %arg9[%c0_41, %c1_42, %c0_43, %c0_44] : memref<1x18x18x48xf32, #tpu.memory_space<vmem>>, vector<1x16x16x48xf32>
    %42 = vector.extract_strided_slice %18 {offsets = [3, 0], sizes = [1, 48], strides = [1, 1]} : vector<9x48xf32> to vector<1x48xf32>
    %43 = vector.shape_cast %42 : vector<1x48xf32> to vector<48xf32>
    %44 = vector.shape_cast %43 : vector<48xf32> to vector<1x1x1x48xf32>
    %45 = vector.broadcast %44 : vector<1x1x1x48xf32> to vector<1x16x16x48xf32>
    %46 = arith.mulf %41, %45 : vector<1x16x16x48xf32>
    %47 = arith.addf %40, %46 : vector<1x16x16x48xf32>
    %c0_45 = arith.constant 0 : index
    %c1_46 = arith.constant 1 : index
    %c1_47 = arith.constant 1 : index
    %c0_48 = arith.constant 0 : index
    %48 = vector.load %arg9[%c0_45, %c1_46, %c1_47, %c0_48] : memref<1x18x18x48xf32, #tpu.memory_space<vmem>>, vector<1x16x16x48xf32>
    %49 = vector.extract_strided_slice %18 {offsets = [4, 0], sizes = [1, 48], strides = [1, 1]} : vector<9x48xf32> to vector<1x48xf32>
    %50 = vector.shape_cast %49 : vector<1x48xf32> to vector<48xf32>
    %51 = vector.shape_cast %50 : vector<48xf32> to vector<1x1x1x48xf32>
    %52 = vector.broadcast %51 : vector<1x1x1x48xf32> to vector<1x16x16x48xf32>
    %53 = arith.mulf %48, %52 : vector<1x16x16x48xf32>
    %54 = arith.addf %47, %53 : vector<1x16x16x48xf32>
    %c0_49 = arith.constant 0 : index
    %c1_50 = arith.constant 1 : index
    %c2_51 = arith.constant 2 : index
    %c0_52 = arith.constant 0 : index
    %55 = vector.load %arg9[%c0_49, %c1_50, %c2_51, %c0_52] : memref<1x18x18x48xf32, #tpu.memory_space<vmem>>, vector<1x16x16x48xf32>
    %56 = vector.extract_strided_slice %18 {offsets = [5, 0], sizes = [1, 48], strides = [1, 1]} : vector<9x48xf32> to vector<1x48xf32>
    %57 = vector.shape_cast %56 : vector<1x48xf32> to vector<48xf32>
    %58 = vector.shape_cast %57 : vector<48xf32> to vector<1x1x1x48xf32>
    %59 = vector.broadcast %58 : vector<1x1x1x48xf32> to vector<1x16x16x48xf32>
    %60 = arith.mulf %55, %59 : vector<1x16x16x48xf32>
    %61 = arith.addf %54, %60 : vector<1x16x16x48xf32>
    %c0_53 = arith.constant 0 : index
    %c2_54 = arith.constant 2 : index
    %c0_55 = arith.constant 0 : index
    %c0_56 = arith.constant 0 : index
    %62 = vector.load %arg9[%c0_53, %c2_54, %c0_55, %c0_56] : memref<1x18x18x48xf32, #tpu.memory_space<vmem>>, vector<1x16x16x48xf32>
    %63 = vector.extract_strided_slice %18 {offsets = [6, 0], sizes = [1, 48], strides = [1, 1]} : vector<9x48xf32> to vector<1x48xf32>
    %64 = vector.shape_cast %63 : vector<1x48xf32> to vector<48xf32>
    %65 = vector.shape_cast %64 : vector<48xf32> to vector<1x1x1x48xf32>
    %66 = vector.broadcast %65 : vector<1x1x1x48xf32> to vector<1x16x16x48xf32>
    %67 = arith.mulf %62, %66 : vector<1x16x16x48xf32>
    %68 = arith.addf %61, %67 : vector<1x16x16x48xf32>
    %c0_57 = arith.constant 0 : index
    %c2_58 = arith.constant 2 : index
    %c1_59 = arith.constant 1 : index
    %c0_60 = arith.constant 0 : index
    %69 = vector.load %arg9[%c0_57, %c2_58, %c1_59, %c0_60] : memref<1x18x18x48xf32, #tpu.memory_space<vmem>>, vector<1x16x16x48xf32>
    %70 = vector.extract_strided_slice %18 {offsets = [7, 0], sizes = [1, 48], strides = [1, 1]} : vector<9x48xf32> to vector<1x48xf32>
    %71 = vector.shape_cast %70 : vector<1x48xf32> to vector<48xf32>
    %72 = vector.shape_cast %71 : vector<48xf32> to vector<1x1x1x48xf32>
    %73 = vector.broadcast %72 : vector<1x1x1x48xf32> to vector<1x16x16x48xf32>
    %74 = arith.mulf %69, %73 : vector<1x16x16x48xf32>
    %75 = arith.addf %68, %74 : vector<1x16x16x48xf32>
    %c0_61 = arith.constant 0 : index
    %c2_62 = arith.constant 2 : index
    %c2_63 = arith.constant 2 : index
    %c0_64 = arith.constant 0 : index
    %76 = vector.load %arg9[%c0_61, %c2_62, %c2_63, %c0_64] : memref<1x18x18x48xf32, #tpu.memory_space<vmem>>, vector<1x16x16x48xf32>
    %77 = vector.extract_strided_slice %18 {offsets = [8, 0], sizes = [1, 48], strides = [1, 1]} : vector<9x48xf32> to vector<1x48xf32>
    %78 = vector.shape_cast %77 : vector<1x48xf32> to vector<48xf32>
    %79 = vector.shape_cast %78 : vector<48xf32> to vector<1x1x1x48xf32>
    %80 = vector.broadcast %79 : vector<1x1x1x48xf32> to vector<1x16x16x48xf32>
    %81 = arith.mulf %76, %80 : vector<1x16x16x48xf32>
    %82 = arith.addf %75, %81 : vector<1x16x16x48xf32>
    %c0_65 = arith.constant 0 : index
    %c0_66 = arith.constant 0 : index
    %83 = vector.load %arg5[%c0_65, %c0_66] : memref<1x48xf32, #tpu.memory_space<vmem>>, vector<1x48xf32>
    %84 = vector.shape_cast %83 : vector<1x48xf32> to vector<1x1x1x48xf32>
    %85 = vector.broadcast %84 : vector<1x1x1x48xf32> to vector<1x16x16x48xf32>
    %86 = arith.addf %82, %85 : vector<1x16x16x48xf32>
    %cst_67 = arith.constant 0.000000e+00 : f32
    %87 = vector.broadcast %cst_67 : f32 to vector<1x16x16x48xf32>
    %88 = arith.maximumf %86, %87 : vector<1x16x16x48xf32>
    %89 = vector.shape_cast %88 : vector<1x16x16x48xf32> to vector<256x48xf32>
    %90 = arith.truncf %89 : vector<256x48xf32> to vector<256x48xbf16>
    %c0_68 = arith.constant 0 : index
    %c0_69 = arith.constant 0 : index
    %91 = vector.load %arg6[%c0_68, %c0_69] : memref<48x72xbf16, #tpu.memory_space<vmem>>, vector<48x72xbf16>
    %cst_70 = arith.constant dense<0.000000e+00> : vector<256x72xf32>
    %92 = tpu.matmul %90, %91, %cst_70 {dimension_numbers = #tpu.dot_dimension_numbers<[1], [0], [0], [1], [0, 0, 1, 1], [], []>} : vector<256x48xbf16>, vector<48x72xbf16>, vector<256x72xf32> -> vector<256x72xf32>
    %c0_71 = arith.constant 0 : index
    %c0_72 = arith.constant 0 : index
    %93 = vector.load %arg7[%c0_71, %c0_72] : memref<1x72xf32, #tpu.memory_space<vmem>>, vector<1x72xf32>
    %94 = vector.broadcast %93 : vector<1x72xf32> to vector<256x72xf32>
    %95 = arith.addf %92, %94 : vector<256x72xf32>
    %cst_73 = arith.constant 0.000000e+00 : f32
    %96 = vector.broadcast %cst_73 : f32 to vector<256x64xf32>
    %97 = vector.extract_strided_slice %1 {offsets = [0, 16], sizes = [256, 4], strides = [1, 1]} : vector<256x24xf32> to vector<256x4xf32>
    %cst_74 = arith.constant 0.000000e+00 : f32
    %98 = vector.broadcast %cst_74 : f32 to vector<256x4xf32>
    %99 = tpu.concatenate %96, %97, %98 in 1 : vector<256x64xf32>, vector<256x4xf32>, vector<256x4xf32> -> vector<256x72xf32>
    %100 = arith.addf %95, %99 : vector<256x72xf32>
    %101 = tpu.transpose %100, [1, 0] : vector<256x72xf32> -> vector<72x256xf32>
    %c0_75 = arith.constant 0 : index
    %c0_76 = arith.constant 0 : index
    %c0_77 = arith.constant 0 : index
    %102 = vector.load %arg8[%c0_75, %c0_76, %c0_77] : memref<1x72x256xf32, #tpu.memory_space<vmem>>, vector<1x72x256xf32>
    %103 = vector.shape_cast %102 : vector<1x72x256xf32> to vector<72x256xf32>
    %104 = vector.shape_cast %101 : vector<72x256xf32> to vector<1x72x256xf32>
    tpu.vector_store %arg8[%c0_75, %c0_76, %c0_77], %104 {strides = array<i32>} : memref<1x72x256xf32, #tpu.memory_space<vmem>>, vector<1x72x256xf32>,
    return
  }
  func.func @transform_0(%arg0: i32) -> (i32, i32, i32) {
    %c0_i32 = arith.constant 0 : i32
    %c0_i32_0 = arith.constant 0 : i32
    %c0_i32_1 = arith.constant 0 : i32
    return %arg0, %c0_i32, %c0_i32_0 : i32, i32, i32
  }
  func.func @transform_1(%arg0: i32) -> (i32, i32) {
    %c0_i32 = arith.constant 0 : i32
    %c0_i32_0 = arith.constant 0 : i32
    %c0_i32_1 = arith.constant 0 : i32
    return %c0_i32, %c0_i32_0 : i32, i32
  }
  func.func @transform_2(%arg0: i32) -> (i32, i32) {
    %c0_i32 = arith.constant 0 : i32
    %c0_i32_0 = arith.constant 0 : i32
    %c0_i32_1 = arith.constant 0 : i32
    return %c0_i32, %c0_i32_0 : i32, i32
  }
  func.func @transform_3(%arg0: i32) -> (i32, i32) {
    %c0_i32 = arith.constant 0 : i32
    %c0_i32_0 = arith.constant 0 : i32
    %c0_i32_1 = arith.constant 0 : i32
    return %c0_i32, %c0_i32_0 : i32, i32
  }
  func.func @transform_4(%arg0: i32) -> (i32, i32) {
    %c0_i32 = arith.constant 0 : i32
    %c0_i32_0 = arith.constant 0 : i32
    %c0_i32_1 = arith.constant 0 : i32
    return %c0_i32, %c0_i32_0 : i32, i32
  }
  func.func @transform_5(%arg0: i32) -> (i32, i32) {
    %c0_i32 = arith.constant 0 : i32
    %c0_i32_0 = arith.constant 0 : i32
    %c0_i32_1 = arith.constant 0 : i32
    return %c0_i32, %c0_i32_0 : i32, i32
  }
  func.func @transform_6(%arg0: i32) -> (i32, i32) {
    %c0_i32 = arith.constant 0 : i32
    %c0_i32_0 = arith.constant 0 : i32
    %c0_i32_1 = arith.constant 0 : i32
    return %c0_i32, %c0_i32_0 : i32, i32
  }
  func.func @transform_7(%arg0: i32) -> (i32, i32, i32) {
    %c0_i32 = arith.constant 0 : i32
    %c0_i32_0 = arith.constant 0 : i32
    %c0_i32_1 = arith.constant 0 : i32
    return %arg0, %c0_i32, %c0_i32_0 : i32, i32, i32
  }
}

</mosaic_0001>

<llo_original>
// kernel: _lambda_.1
$region0: #{_lambda_.1}
  #allocation0 [shape = 'u32[]', space=smem, size = 0x4, offset = 0x4, fixed_abs, tag = 'smem constant byte address 0x4 - core index']
  #allocation1 [shape = 'u32[144,128]{1,0:T(1,128)}', space=vmem, size = 0x12000, scoped, tag = 'internal scratch']
  #allocation2 [shape = 'f32[1,18,18,48]{3,2,1,0:T(8,128)}', space=vmem, size = 0x36000, scoped, tag = 'scratch operand']
  %s0 = inlined_call_operand.hbm [shape: f32[2,256,24], index: 0, kind: input, shape index: {}]
  %s1 = inlined_call_operand.hbm [shape: bf16[24,48], index: 1, kind: input, shape index: {}]
  %s2 = inlined_call_operand.vmem [shape: f32[1,48], index: 2, kind: input, shape index: {}]
  %s3 = inlined_call_operand.hbm [shape: f32[9,48], index: 3, kind: input, shape index: {}]
  %s4 = inlined_call_operand.vmem [shape: f32[1,48], index: 4, kind: input, shape index: {}]
  %s5 = inlined_call_operand.vmem [shape: bf16[48,72], index: 5, kind: input, shape index: {}]
  %s6 = inlined_call_operand.vmem [shape: f32[1,72], index: 6, kind: input, shape index: {}]
  %s7 = inlined_call_operand.vmem [shape: f32[2,72,256], index: 7, kind: output, shape index: {}]
  %s8 = sld [smem:[#allocation0]]
  $region73: #{_lambda_.1} parent=0
    _
  %s10 = ssub.s32 1, %s8
  %s11 = scalar_select 0, %s10, %s8
  $region1: #{_lambda_.1} parent=0
    #allocation3 [shape = 'u8[262144]{0}', space=vmem, size = 0x40000, scoped, tag = 'input window, operand 0']
    #allocation4 [shape = 's32[2]{0}', space=sflag, size = 0x8, scoped, tag = 'scoped memory for _lambda_.1']
    #allocation5 [shape = 'u8[6144]{0}', space=vmem, size = 0x1800, scoped, tag = 'input window, operand 1, single buffered']
    #allocation6 [shape = 's32[1]{0}', space=sflag, size = 0x4, scoped, tag = 'scoped memory for _lambda_.1']
    #allocation7 [shape = 'u8[8192]{0}', space=vmem, size = 0x2000, scoped, tag = 'input window, operand 3, single buffered']
    %12 = vsyncpa [#allocation4], 0
    %s13 = scalar_lea.sflag [#allocation4], 1
    %14 = vsyncpa %s13, 0
    %15 = vsyncpa [#allocation6], 0
    loop: start=0, step=1, limit=4
    $region2: #{_lambda_.1} parent=1 // loop_pre_header
      _
    $region3: #{_lambda_.1} parent=1 // loop_header
      %s17 = sphi 0, %s21
      %p18 = scmp.ge.s32.totalorder %s17, 4
      %s27 = sphi 0, %s29
      %s30 = sphi 0, %s27
      %s31 = sphi 0, %s30
      %s47 = sphi 0, %s31
      %s51 = sphi 0, %s51
      %s53 = sphi 0, %s51
      %s54 = sphi 0, %s53
      %s68 = sphi 0, %s54
      %s72 = sphi 0, %s72
      %s74 = sphi 0, %s72
      %s75 = sphi 0, %s74
      %s89 = sphi 0, %s75
      %s93 = sphi 0, %s93
      %s95 = sphi 0, %s93
      %s96 = sphi 0, %s95
      %s110 = sphi 0, %s96
      %s114 = sphi 0, %s114
      %s116 = sphi 0, %s114
      %s117 = sphi 0, %s116
      %s131 = sphi 0, %s117
      %s135 = sphi 0, %s135
      %s137 = sphi 0, %s135
      %s138 = sphi 0, %s137
      %s152 = sphi 0, %s138
      %s156 = sphi 0, %s156
      %s158 = sphi 0, %s156
      %s159 = sphi 0, %s158
      %s173 = sphi 0, %s159
      %s179 = sphi 0, %s181
      %s182 = sphi 0, %s179
      %s183 = sphi 0, %s182
      %s199 = sphi 0, %s183
    $region4: #{_lambda_.1} parent=1 // loop_header_branch
      %20 = sbr.rel (%p18) target = $region8
    $region5: #{_lambda_.1} parent=1 // loop_body
      %s22 = ssub.s32 %s17, 1
      %s23 = ssub.s32 %s17, 2
      %s24 = sadd.s32 %s17, 1
      %s25 = ssub.s32 %s17, %s24
      %p26 = scmp.eq.s32.totalorder %s25, 0
      %s28 = sadd.s32 %s27, 1
      %s29 = scalar_select %p26, %s27, %s28
      %p32 = pneg %p26
      %p33 = scmp.eq.s32.totalorder %s17, 1
      %p34 = por %p32, %p33
      %p35 = scmp.ne.s32.totalorder %s27, %s30
      %p36 = scmp.eq.s32.totalorder %s17, 0
      %p37 = por %p35, %p36
      %p38 = scmp.ne.s32.totalorder %s27, %s30
      %p39 = scmp.eq.s32.totalorder %s22, 1
      %p40 = por %p38, %p39
      %p41 = scmp.ne.s32.totalorder %s30, %s31
      %p42 = scmp.eq.s32.totalorder %s22, 0
      %p43 = por %p41, %p42
      %p44 = scmp.ne.s32.totalorder %s30, %s31
      %p45 = scmp.eq.s32.totalorder %s23, 1
      %p46 = por %p44, %p45
      %p48 = scmp.ne.s32.totalorder %s31, %s47
      %p49 = scmp.eq.s32.totalorder %s23, 0
      %p50 = por %p48, %p49
      %s52 = sadd.s32 %s51, 1
      %p55 = scmp.eq.s32.totalorder %s17, 1
      %p56 = scmp.ne.s32.totalorder %s51, %s53
      %p57 = scmp.eq.s32.totalorder %s17, 0
      %p58 = por %p56, %p57
      %p59 = scmp.ne.s32.totalorder %s51, %s53
      %p60 = scmp.eq.s32.totalorder %s22, 1
      %p61 = por %p59, %p60
      %p62 = scmp.ne.s32.totalorder %s53, %s54
      %p63 = scmp.eq.s32.totalorder %s22, 0
      %p64 = por %p62, %p63
      %p65 = scmp.ne.s32.totalorder %s53, %s54
      %p66 = scmp.eq.s32.totalorder %s23, 1
      %p67 = por %p65, %p66
      %p69 = scmp.ne.s32.totalorder %s54, %s68
      %p70 = scmp.eq.s32.totalorder %s23, 0
      %p71 = por %p69, %p70
      %s73 = sadd.s32 %s72, 1
      %p76 = scmp.eq.s32.totalorder %s17, 1
      %p77 = scmp.ne.s32.totalorder %s72, %s74
      %p78 = scmp.eq.s32.totalorder %s17, 0
      %p79 = por %p77, %p78
      %p80 = scmp.ne.s32.totalorder %s72, %s74
      %p81 = scmp.eq.s32.totalorder %s22, 1
      %p82 = por %p80, %p81
      %p83 = scmp.ne.s32.totalorder %s74, %s75
      %p84 = scmp.eq.s32.totalorder %s22, 0
      %p85 = por %p83, %p84
      %p86 = scmp.ne.s32.totalorder %s74, %s75
      %p87 = scmp.eq.s32.totalorder %s23, 1
      %p88 = por %p86, %p87
      %p90 = scmp.ne.s32.totalorder %s75, %s89
      %p91 = scmp.eq.s32.totalorder %s23, 0
      %p92 = por %p90, %p91
      %s94 = sadd.s32 %s93, 1
      %p97 = scmp.eq.s32.totalorder %s17, 1
      %p98 = scmp.ne.s32.totalorder %s93, %s95
      %p99 = scmp.eq.s32.totalorder %s17, 0
      %p100 = por %p98, %p99
      %p101 = scmp.ne.s32.totalorder %s93, %s95
      %p102 = scmp.eq.s32.totalorder %s22, 1
      %p103 = por %p101, %p102
      %p104 = scmp.ne.s32.totalorder %s95, %s96
      %p105 = scmp.eq.s32.totalorder %s22, 0
      %p106 = por %p104, %p105
      %p107 = scmp.ne.s32.totalorder %s95, %s96
      %p108 = scmp.eq.s32.totalorder %s23, 1
      %p109 = por %p107, %p108
      %p111 = scmp.ne.s32.totalorder %s96, %s110
      %p112 = scmp.eq.s32.totalorder %s23, 0
      %p113 = por %p111, %p112
      %s115 = sadd.s32 %s114, 1
      %p118 = scmp.eq.s32.totalorder %s17, 1
      %p119 = scmp.ne.s32.totalorder %s114, %s116
      %p120 = scmp.eq.s32.totalorder %s17, 0
      %p121 = por %p119, %p120
      %p122 = scmp.ne.s32.totalorder %s114, %s116
      %p123 = scmp.eq.s32.totalorder %s22, 1
      %p124 = por %p122, %p123
      %p125 = scmp.ne.s32.totalorder %s116, %s117
      %p126 = scmp.eq.s32.totalorder %s22, 0
      %p127 = por %p125, %p126
      %p128 = scmp.ne.s32.totalorder %s116, %s117
      %p129 = scmp.eq.s32.totalorder %s23, 1
      %p130 = por %p128, %p129
      %p132 = scmp.ne.s32.totalorder %s117, %s131
      %p133 = scmp.eq.s32.totalorder %s23, 0
      %p134 = por %p132, %p133
      %s136 = sadd.s32 %s135, 1
      %p139 = scmp.eq.s32.totalorder %s17, 1
      %p140 = scmp.ne.s32.totalorder %s135, %s137
      %p141 = scmp.eq.s32.totalorder %s17, 0
      %p142 = por %p140, %p141
      %p143 = scmp.ne.s32.totalorder %s135, %s137
      %p144 = scmp.eq.s32.totalorder %s22, 1
      %p145 = por %p143, %p144
      %p146 = scmp.ne.s32.totalorder %s137, %s138
      %p147 = scmp.eq.s32.totalorder %s22, 0
      %p148 = por %p146, %p147
      %p149 = scmp.ne.s32.totalorder %s137, %s138
      %p150 = scmp.eq.s32.totalorder %s23, 1
      %p151 = por %p149, %p150
      %p153 = scmp.ne.s32.totalorder %s138, %s152
      %p154 = scmp.eq.s32.totalorder %s23, 0
      %p155 = por %p153, %p154
      %s157 = sadd.s32 %s156, 1
      %p160 = scmp.eq.s32.totalorder %s17, 1
      %p161 = scmp.ne.s32.totalorder %s156, %s158
      %p162 = scmp.eq.s32.totalorder %s17, 0
      %p163 = por %p161, %p162
      %p164 = scmp.ne.s32.totalorder %s156, %s158
      %p165 = scmp.eq.s32.totalorder %s22, 1
      %p166 = por %p164, %p165
      %p167 = scmp.ne.s32.totalorder %s158, %s159
      %p168 = scmp.eq.s32.totalorder %s22, 0
      %p169 = por %p167, %p168
      %p170 = scmp.ne.s32.totalorder %s158, %s159
      %p171 = scmp.eq.s32.totalorder %s23, 1
      %p172 = por %p170, %p171
      %p174 = scmp.ne.s32.totalorder %s159, %s173
      %p175 = scmp.eq.s32.totalorder %s23, 0
      %p176 = por %p174, %p175
      %s177 = ssub.s32 %s17, %s24
      %p178 = scmp.eq.s32.totalorder %s177, 0
      %s180 = sadd.s32 %s179, 1
      %s181 = scalar_select %p178, %s179, %s180
      %p184 = pneg %p178
      %p185 = scmp.eq.s32.totalorder %s17, 1
      %p186 = por %p184, %p185
      %p187 = scmp.ne.s32.totalorder %s179, %s182
      %p188 = scmp.eq.s32.totalorder %s17, 0
      %p189 = por %p187, %p188
      %p190 = scmp.ne.s32.totalorder %s179, %s182
      %p191 = scmp.eq.s32.totalorder %s22, 1
      %p192 = por %p190, %p191
      %p193 = scmp.ne.s32.totalorder %s182, %s183
      %p194 = scmp.eq.s32.totalorder %s22, 0
      %p195 = por %p193, %p194
      %p196 = scmp.ne.s32.totalorder %s182, %s183
      %p197 = scmp.eq.s32.totalorder %s23, 1
      %p198 = por %p196, %p197
      %p200 = scmp.ne.s32.totalorder %s183, %s199
      %p201 = scmp.eq.s32.totalorder %s23, 0
      %p202 = por %p200, %p201
      %p203 = scmp.le.s32.totalorder 1, %s17
      %p204 = scmp.lt.s32.totalorder %s17, 3
      %p205 = pnand %p203, %p204
      %p206 = pneg %p205
      // Predicated region
      $region9: #{_lambda_.1} parent=5 // pred_check
        _
      $region10: #{_lambda_.1} parent=5 // pred_check_branch
        %208 = sbr.rel (%p205) target = $region12
      $region11: #{_lambda_.1} parent=5 // pred_region
        %s209 = ssub.s32 %s17, 1
        // Predicated region
        $region13: #{_lambda_.1} parent=11 // pred_check
          %p210 = pneg %p64
        $region14: #{_lambda_.1} parent=11 // pred_check_branch
          %212 = sbr.rel (%p210) target = $region16
        $region15: #{_lambda_.1} parent=11 // pred_region
          %s214 = ssub.s32 192, 192
          %215 = vsyncadd [#allocation6], %s214
          %s216 = sshll.u32 [#allocation5], 4
          %s217 = int_to_ptr.vmem [resolvable:$true] %s216
          %222 = dma.hbm_to_vmem [thread:$0]  %s1, 192, %s217, [#allocation6], 64, 64, 4
        $region16: #{_lambda_.1} parent=11 // pred_fallthru
          _
        // Predicated region
        $region17: #{_lambda_.1} parent=11 // pred_check
          %p223 = pneg %p85
        $region18: #{_lambda_.1} parent=11 // pred_check_branch
          %225 = sbr.rel (%p223) target = $region20
        $region19: #{_lambda_.1} parent=11 // pred_region
          _
        $region20: #{_lambda_.1} parent=11 // pred_fallthru
          _
        // Predicated region
        $region21: #{_lambda_.1} parent=11 // pred_check
          %p226 = pneg %p106
        $region22: #{_lambda_.1} parent=11 // pred_check_branch
          %228 = sbr.rel (%p226) target = $region24
        $region23: #{_lambda_.1} parent=11 // pred_region
          %s230 = ssub.s32 256, 256
          %231 = vsyncadd [#allocation6], %s230
          %s232 = sshll.u32 [#allocation7], 4
          %s233 = int_to_ptr.vmem [resolvable:$true] %s232
          %238 = dma.hbm_to_vmem [thread:$0]  %s3, 256, %s233, [#allocation6], 128, 128, 8
        $region24: #{_lambda_.1} parent=11 // pred_fallthru
          _
        // Predicated region
        $region25: #{_lambda_.1} parent=11 // pred_check
          %p239 = pneg %p127
        $region26: #{_lambda_.1} parent=11 // pred_check_branch
          %241 = sbr.rel (%p239) target = $region28
        $region27: #{_lambda_.1} parent=11 // pred_region
          _
        $region28: #{_lambda_.1} parent=11 // pred_fallthru
          _
        // Predicated region
        $region29: #{_lambda_.1} parent=11 // pred_check
          %p242 = pneg %p148
        $region30: #{_lambda_.1} parent=11 // pred_check_branch
          %244 = sbr.rel (%p242) target = $region32
        $region31: #{_lambda_.1} parent=11 // pred_region
          _
        $region32: #{_lambda_.1} parent=11 // pred_fallthru
          _
        // Predicated region
        $region33: #{_lambda_.1} parent=11 // pred_check
          %p245 = pneg %p169
        $region34: #{_lambda_.1} parent=11 // pred_check_branch
          %247 = sbr.rel (%p245) target = $region36
        $region35: #{_lambda_.1} parent=11 // pred_region
          _
        $region36: #{_lambda_.1} parent=11 // pred_fallthru
          _
      $region12: #{_lambda_.1} parent=5 // pred_fallthru
        _
      %p248 = scmp.lt.s32.totalorder %s17, 2
      // Predicated region
      $region37: #{_lambda_.1} parent=5 // pred_check
        %p249 = pneg %p248
      $region38: #{_lambda_.1} parent=5 // pred_check_branch
        %251 = sbr.rel (%p249) target = $region40
      $region39: #{_lambda_.1} parent=5 // pred_region
        // Predicated region
        $region41: #{_lambda_.1} parent=39 // pred_check
          %p252 = pneg %p37
        $region42: #{_lambda_.1} parent=39 // pred_check_branch
          %254 = sbr.rel (%p252) target = $region44
        $region43: #{_lambda_.1} parent=39 // pred_region
          %s255 = sand.u32 %s27, 1
          %s256 = scalar_lea.sflag [#allocation4], %s255
          %s257 = sand.u32 %s27, 1
          %s258 = smul.addr %s257, 256
          %s259 = scalar_lea.vmem [#allocation3], %s258
          %s261 = ssub.s32 4096, 4096
          %262 = vsyncadd %s256, %s261
          %s263 = smul.addr %s17, 32
          %s264 = smul.addr %s263, 128
          %s265 = scalar_lea.hbm %s0, %s264
          %s266 = sshll.u32 %s259, 4
          %s267 = int_to_ptr.vmem [resolvable:$true] %s266
          %272 = dma.hbm_to_vmem [thread:$0]  %s265, 4096, %s267, %s256, 128, 128, 8
        $region44: #{_lambda_.1} parent=39 // pred_fallthru
          _
      $region40: #{_lambda_.1} parent=5 // pred_fallthru
        _
      %p273 = scmp.le.s32.totalorder 1, %s17
      %p274 = scmp.lt.s32.totalorder %s17, 3
      %p275 = pnand %p273, %p274
      %p276 = pneg %p275
      // Predicated region
      $region45: #{_lambda_.1} parent=5 // pred_check
        _
      $region46: #{_lambda_.1} parent=5 // pred_check_branch
        %278 = sbr.rel (%p275) target = $region48
      $region47: #{_lambda_.1} parent=5 // pred_region
        %s279 = ssub.s32 %s17, 1
        %s280 = sand.u32 %s30, 1
        %s281 = scalar_lea.sflag [#allocation4], %s280
        %s282 = sand.u32 %s30, 1
        %s283 = smul.addr %s282, 256
        %s284 = scalar_lea.vmem [#allocation3], %s283
        // Predicated region
        $region49: #{_lambda_.1} parent=47 // pred_check
          %p285 = pneg %p43
        $region50: #{_lambda_.1} parent=47 // pred_check_branch
          %287 = sbr.rel (%p285) target = $region52
        $region51: #{_lambda_.1} parent=47 // pred_region
          %288 = dma.done %s281, 4096
        $region52: #{_lambda_.1} parent=47 // pred_fallthru
          _
        // Predicated region
        $region53: #{_lambda_.1} parent=47 // pred_check
          %p289 = pneg %p64
        $region54: #{_lambda_.1} parent=47 // pred_check_branch
          %291 = sbr.rel (%p289) target = $region56
        $region55: #{_lambda_.1} parent=47 // pred_region
          %292 = dma.done [#allocation6], 192
        $region56: #{_lambda_.1} parent=47 // pred_fallthru
          _
        // Predicated region
        $region57: #{_lambda_.1} parent=47 // pred_check
          %p293 = pneg %p106
        $region58: #{_lambda_.1} parent=47 // pred_check_branch
          %295 = sbr.rel (%p293) target = $region60
        $region59: #{_lambda_.1} parent=47 // pred_region
          %296 = dma.done [#allocation6], 256
        $region60: #{_lambda_.1} parent=47 // pred_fallthru
          _
        %s297 = sand.u32 %s30, 1
        %s298 = scalar_lea.sflag [#allocation4], %s297
        %s299 = sand.u32 %s30, 1
        %s300 = smul.addr %s299, 256
        %s301 = scalar_lea.vmem [#allocation3], %s300
        %p302 = pneg %p43
        %p303 = pneg %p40
        %p304 = pneg %p64
        %p305 = pneg %p61
        %p306 = pneg %p85
        %p307 = pneg %p82
        %p308 = pneg %p106
        %p309 = pneg %p103
        %p310 = pneg %p127
        %p311 = pneg %p124
        %p312 = pneg %p148
        %p313 = pneg %p145
        %p314 = pneg %p169
        %p315 = pneg %p166
        %p316 = pneg %p195
        %p317 = pneg %p192
        %p318 = scmp.lt.s32.totalorder %s22, 1
        %s319 = scalar_select %p318, %s22, 1
        %s320 = smul.addr %s319, 18
        %s321 = smul.addr %s320, 8
        %s322 = scalar_lea.vmem %s7, %s321
        %p323 = scmp.lt.s32.totalorder %s22, 1
        %s324 = scalar_select %p323, %s22, 1
        %s325 = smul.addr %s324, 18
        %s326 = smul.addr %s325, 8
        %s327 = scalar_lea.vmem %s7, %s326
        %v329 = vld [vmem:[%s284] sm:$0xff]
        %v330 = vld [vmem:[%s284 + $0x8] sm:$0xff]
        %v331 = vld [vmem:[%s284 + $0x10] sm:$0xff]
        %v332 = vld [vmem:[%s284 + $0x18] sm:$0xff]
        %v333 = vld [vmem:[%s284 + $0x20] sm:$0xff]
        %v334 = vld [vmem:[%s284 + $0x28] sm:$0xff]
        %v335 = vld [vmem:[%s284 + $0x30] sm:$0xff]
        %v336 = vld [vmem:[%s284 + $0x38] sm:$0xff]
        %v337 = vld [vmem:[%s284 + $0x40] sm:$0xff]
        %v338 = vld [vmem:[%s284 + $0x48] sm:$0xff]
        %v339 = vld [vmem:[%s284 + $0x50] sm:$0xff]
        %v340 = vld [vmem:[%s284 + $0x58] sm:$0xff]
        %v341 = vld [vmem:[%s284 + $0x60] sm:$0xff]
        %v342 = vld [vmem:[%s284 + $0x68] sm:$0xff]
        %v343 = vld [vmem:[%s284 + $0x70] sm:$0xff]
        %v344 = vld [vmem:[%s284 + $0x78] sm:$0xff]
        %v345 = vld [vmem:[%s284 + $0x80] sm:$0xff]
        %v346 = vld [vmem:[%s284 + $0x88] sm:$0xff]
        %v347 = vld [vmem:[%s284 + $0x90] sm:$0xff]
        %v348 = vld [vmem:[%s284 + $0x98] sm:$0xff]
        %v349 = vld [vmem:[%s284 + $0xa0] sm:$0xff]
        %v350 = vld [vmem:[%s284 + $0xa8] sm:$0xff]
        %v351 = vld [vmem:[%s284 + $0xb0] sm:$0xff]
        %v352 = vld [vmem:[%s284 + $0xb8] sm:$0xff]
        %v353 = vld [vmem:[%s284 + $0xc0] sm:$0xff]
        %v354 = vld [vmem:[%s284 + $0xc8] sm:$0xff]
        %v355 = vld [vmem:[%s284 + $0xd0] sm:$0xff]
        %v356 = vld [vmem:[%s284 + $0xd8] sm:$0xff]
        %v357 = vld [vmem:[%s284 + $0xe0] sm:$0xff]
        %v358 = vld [vmem:[%s284 + $0xe8] sm:$0xff]
        %v359 = vld [vmem:[%s284 + $0xf0] sm:$0xff]
        %v360 = vld [vmem:[%s284 + $0xf8] sm:$0xff]
        %v361 = vpack.c.bf16 %v330, %v329
        %v362 = vpack.c.bf16 %v332, %v331
        %v363 = vpack.c.bf16 %v334, %v333
        %v364 = vpack.c.bf16 %v336, %v335
        %v365 = vpack.c.bf16 %v338, %v337
        %v366 = vpack.c.bf16 %v340, %v339
        %v367 = vpack.c.bf16 %v342, %v341
        %v368 = vpack.c.bf16 %v344, %v343
        %v369 = vpack.c.bf16 %v346, %v345
        %v370 = vpack.c.bf16 %v348, %v347
        %v371 = vpack.c.bf16 %v350, %v349
        %v372 = vpack.c.bf16 %v352, %v351
        %v373 = vpack.c.bf16 %v354, %v353
        %v374 = vpack.c.bf16 %v356, %v355
        %v375 = vpack.c.bf16 %v358, %v357
        %v376 = vpack.c.bf16 %v360, %v359
        %v377 = vld [vmem:[#allocation5] sm:$0xf]
        %v378 = vld [vmem:[#allocation5 + $0x4] sm:$0xf]
        %v379 = vld [vmem:[#allocation5 + $0x8] sm:$0xf]
        %v380 = vld [vmem:[%s2] sm:$0x1]
        %v382 = vlaneseq
        %v383 = vshrl.u32 %v382, 7
        %v384 = vsub.s32 0, %v383
        %v385 = vrot.slane %v380, %v384
        %v390 = vunpack.c.l.b16 %v377
        %v391 = vunpack.c.l.b16 %v378
        %v392 = vunpack.c.l.b16 %v379
        %v393 = vpack.c.b16 %v391, %v390
        %v394 = vpack.c.b16 %v392, %v392
        %vm396 = vcmask 195584
        %v398 = vsel %vm396, %v361, 0
        %v401 = vsel %vm396, %v362, 0
        %v404 = vsel %vm396, %v363, 0
        %v407 = vsel %vm396, %v364, 0
        %v410 = vsel %vm396, %v365, 0
        %v413 = vsel %vm396, %v366, 0
        %v416 = vsel %vm396, %v367, 0
        %v419 = vsel %vm396, %v368, 0
        %v422 = vsel %vm396, %v369, 0
        %v425 = vsel %vm396, %v370, 0
        %v428 = vsel %vm396, %v371, 0
        %v431 = vsel %vm396, %v372, 0
        %v434 = vsel %vm396, %v373, 0
        %v437 = vsel %vm396, %v374, 0
        %v440 = vsel %vm396, %v375, 0
        %v443 = vsel %vm396, %v376, 0
        %vm445 = vcmask 1043456
        %v447 = vsel %vm445, %v394, 0
        %449 = vmatprep.subr.bf16.mxu0 0
        %450 = vmatpush1.bf16.msra.mxu0 %v393
        %451 = vmatprep.subr.bf16.mxu0 0
        %452 = vmatpush1.bf16.msra.mxu0 %v447
        %453 = vmatprep.subr.bf16.mxu0 0
        %454 = vmatpush1.bf16.msra.mxu0 0
        %455 = vmatprep.subr.bf16.mxu0 0
        %456 = vmatpush1.bf16.msra.mxu0 0
        %457 = vmatprep.subr.bf16.mxu0 0
        %458 = vmatpush1.bf16.msra.mxu0 0
        %459 = vmatprep.subr.bf16.mxu0 0
        %460 = vmatpush1.bf16.msra.mxu0 0
        %461 = vmatprep.subr.bf16.mxu0 0
        %462 = vmatpush1.bf16.msra.mxu0 0
        %463 = vmatprep.subr.bf16.mxu0 0
        %464 = vmatpush1.bf16.msra.mxu0 0
        %465 = vmatprep.subr.bf16.mxu0 0
        %466 = vmatpush1.bf16.msra.mxu0 0
        %467 = vmatprep.subr.bf16.mxu0 0
        %468 = vmatpush1.bf16.msra.mxu0 0
        %469 = vmatprep.subr.bf16.mxu0 0
        %470 = vmatpush1.bf16.msra.mxu0 0
        %471 = vmatprep.subr.bf16.mxu0 0
        %472 = vmatpush1.bf16.msra.mxu0 0
        %473 = vmatprep.subr.bf16.mxu0 0
        %474 = vmatpush1.bf16.msra.mxu0 0
        %475 = vmatprep.subr.bf16.mxu0 0
        %476 = vmatpush1.bf16.msra.mxu0 0
        %477 = vmatprep.subr.bf16.mxu0 0
        %478 = vmatpush1.bf16.msra.mxu0 0
        %479 = vmatprep.subr.bf16.mxu0 0
        %480 = vmatpush1.bf16.msra.mxu0 0
        %481 = vmatprep.mubr.bf16.mxu0 0
        %482 = vmatmul.mubr.bf16.gmra.mrb[0].mxu0 %v398
        %v483 = vpop.f32.mrb[0].mxu0
        %v484 = vadd.f32 %v385, %v483
        %v485 = vpop.f32.mrb[0].mxu0
        %v486 = vpop.f32.mrb[0].mxu0
        %v487 = vadd.f32 %v385, %v486
        %v488 = vpop.f32.mrb[0].mxu0
        %489 = vmatprep.mubr.bf16.mxu0 0
        %490 = vmatmul.mubr.bf16.gmra.mrb[0].mxu0 %v401
        %v491 = vpop.f32.mrb[0].mxu0
        %v492 = vadd.f32 %v385, %v491
        %v493 = vpop.f32.mrb[0].mxu0
        %v494 = vpop.f32.mrb[0].mxu0
        %v495 = vadd.f32 %v385, %v494
        %v496 = vpop.f32.mrb[0].mxu0
        %497 = vmatprep.mubr.bf16.mxu0 0
        %498 = vmatmul.mubr.bf16.gmra.mrb[0].mxu0 %v404
        %v499 = vpop.f32.mrb[0].mxu0
        %v500 = vadd.f32 %v385, %v499
        %v501 = vpop.f32.mrb[0].mxu0
        %v502 = vpop.f32.mrb[0].mxu0
        %v503 = vadd.f32 %v385, %v502
        %v504 = vpop.f32.mrb[0].mxu0
        %505 = vmatprep.mubr.bf16.mxu0 0
        %506 = vmatmul.mubr.bf16.gmra.mrb[0].mxu0 %v407
        %v507 = vpop.f32.mrb[0].mxu0
        %v508 = vadd.f32 %v385, %v507
        %v509 = vpop.f32.mrb[0].mxu0
        %v510 = vpop.f32.mrb[0].mxu0
        %v511 = vadd.f32 %v385, %v510
        %v512 = vpop.f32.mrb[0].mxu0
        %513 = vmatprep.mubr.bf16.mxu0 0
        %514 = vmatmul.mubr.bf16.gmra.mrb[0].mxu0 %v410
        %v515 = vpop.f32.mrb[0].mxu0
        %v516 = vadd.f32 %v385, %v515
        %v517 = vpop.f32.mrb[0].mxu0
        %v518 = vpop.f32.mrb[0].mxu0
        %v519 = vadd.f32 %v385, %v518
        %v520 = vpop.f32.mrb[0].mxu0
        %521 = vmatprep.mubr.bf16.mxu0 0
        %522 = vmatmul.mubr.bf16.gmra.mrb[0].mxu0 %v413
        %v523 = vpop.f32.mrb[0].mxu0
        %v524 = vadd.f32 %v385, %v523
        %v525 = vpop.f32.mrb[0].mxu0
        %v526 = vpop.f32.mrb[0].mxu0
        %v527 = vadd.f32 %v385, %v526
        %v528 = vpop.f32.mrb[0].mxu0
        %529 = vmatprep.mubr.bf16.mxu0 0
        %530 = vmatmul.mubr.bf16.gmra.mrb[0].mxu0 %v416
        %v531 = vpop.f32.mrb[0].mxu0
        %v532 = vadd.f32 %v385, %v531
        %v533 = vpop.f32.mrb[0].mxu0
        %v534 = vpop.f32.mrb[0].mxu0
        %v535 = vadd.f32 %v385, %v534
        %v536 = vpop.f32.mrb[0].mxu0
        %537 = vmatprep.mubr.bf16.mxu0 0
        %538 = vmatmul.mubr.bf16.gmra.mrb[0].mxu0 %v419
        %v539 = vpop.f32.mrb[0].mxu0
        %v540 = vadd.f32 %v385, %v539
        %v541 = vpop.f32.mrb[0].mxu0
        %v542 = vpop.f32.mrb[0].mxu0
        %v543 = vadd.f32 %v385, %v542
        %v544 = vpop.f32.mrb[0].mxu0
        %545 = vmatprep.mubr.bf16.mxu0 0
        %546 = vmatmul.mubr.bf16.gmra.mrb[0].mxu0 %v422
        %v547 = vpop.f32.mrb[0].mxu0
        %v548 = vadd.f32 %v385, %v547
        %v549 = vpop.f32.mrb[0].mxu0
        %v550 = vpop.f32.mrb[0].mxu0
        %v551 = vadd.f32 %v385, %v550
        %v552 = vpop.f32.mrb[0].mxu0
        %553 = vmatprep.mubr.bf16.mxu0 0
        %554 = vmatmul.mubr.bf16.gmra.mrb[0].mxu0 %v425
        %v555 = vpop.f32.mrb[0].mxu0
        %v556 = vadd.f32 %v385, %v555
        %v557 = vpop.f32.mrb[0].mxu0
        %v558 = vpop.f32.mrb[0].mxu0
        %v559 = vadd.f32 %v385, %v558
        %v560 = vpop.f32.mrb[0].mxu0
        %561 = vmatprep.mubr.bf16.mxu0 0
        %562 = vmatmul.mubr.bf16.gmra.mrb[0].mxu0 %v428
        %v563 = vpop.f32.mrb[0].mxu0
        %v564 = vadd.f32 %v385, %v563
        %v565 = vpop.f32.mrb[0].mxu0
        %v566 = vpop.f32.mrb[0].mxu0
        %v567 = vadd.f32 %v385, %v566
        %v568 = vpop.f32.mrb[0].mxu0
        %569 = vmatprep.mubr.bf16.mxu0 0
        %570 = vmatmul.mubr.bf16.gmra.mrb[0].mxu0 %v431
        %v571 = vpop.f32.mrb[0].mxu0
        %v572 = vadd.f32 %v385, %v571
        %v573 = vpop.f32.mrb[0].mxu0
        %v574 = vpop.f32.mrb[0].mxu0
        %v575 = vadd.f32 %v385, %v574
        %v576 = vpop.f32.mrb[0].mxu0
        %577 = vmatprep.mubr.bf16.mxu0 0
        %578 = vmatmul.mubr.bf16.gmra.mrb[0].mxu0 %v434
        %v579 = vpop.f32.mrb[0].mxu0
        %v580 = vadd.f32 %v385, %v579
        %v581 = vpop.f32.mrb[0].mxu0
        %v582 = vpop.f32.mrb[0].mxu0
        %v583 = vadd.f32 %v385, %v582
        %v584 = vpop.f32.mrb[0].mxu0
        %585 = vmatprep.mubr.bf16.mxu0 0
        %586 = vmatmul.mubr.bf16.gmra.mrb[0].mxu0 %v437
        %v587 = vpop.f32.mrb[0].mxu0
        %v588 = vadd.f32 %v385, %v587
        %v589 = vpop.f32.mrb[0].mxu0
        %v590 = vpop.f32.mrb[0].mxu0
        %v591 = vadd.f32 %v385, %v590
        %v592 = vpop.f32.mrb[0].mxu0
        %593 = vmatprep.mubr.bf16.mxu0 0
        %594 = vmatmul.mubr.bf16.gmra.mrb[0].mxu0 %v440
        %v595 = vpop.f32.mrb[0].mxu0
        %v596 = vadd.f32 %v385, %v595
        %v597 = vpop.f32.mrb[0].mxu0
        %v598 = vpop.f32.mrb[0].mxu0
        %v599 = vadd.f32 %v385, %v598
        %v600 = vpop.f32.mrb[0].mxu0
        %601 = vmatprep.mubr.bf16.mxu0 0
        %602 = vmatmul.mubr.bf16.gmra.mrb[0].mxu0 %v443
        %v603 = vpop.f32.mrb[0].mxu0
        %v604 = vadd.f32 %v385, %v603
        %v605 = vpop.f32.mrb[0].mxu0
        %v606 = vpop.f32.mrb[0].mxu0
        %v607 = vadd.f32 %v385, %v606
        %v608 = vpop.f32.mrb[0].mxu0
        %609 = vdwg.mxu0
        %v610 = vmax.f32 %v484, 0.0
        %v611 = vmax.f32 %v487, 0.0
        %v612 = vmax.f32 %v492, 0.0
        %v613 = vmax.f32 %v495, 0.0
        %v614 = vmax.f32 %v500, 0.0
        %v615 = vmax.f32 %v503, 0.0
        %v616 = vmax.f32 %v508, 0.0
        %v617 = vmax.f32 %v511, 0.0
        %v618 = vmax.f32 %v516, 0.0
        %v619 = vmax.f32 %v519, 0.0
        %v620 = vmax.f32 %v524, 0.0
        %v621 = vmax.f32 %v527, 0.0
        %v622 = vmax.f32 %v532, 0.0
        %v623 = vmax.f32 %v535, 0.0
        %v624 = vmax.f32 %v540, 0.0
        %v625 = vmax.f32 %v543, 0.0
        %v626 = vmax.f32 %v548, 0.0
        %v627 = vmax.f32 %v551, 0.0
        %v628 = vmax.f32 %v556, 0.0
        %v629 = vmax.f32 %v559, 0.0
        %v630 = vmax.f32 %v564, 0.0
        %v631 = vmax.f32 %v567, 0.0
        %v632 = vmax.f32 %v572, 0.0
        %v633 = vmax.f32 %v575, 0.0
        %v634 = vmax.f32 %v580, 0.0
        %v635 = vmax.f32 %v583, 0.0
        %v636 = vmax.f32 %v588, 0.0
        %v637 = vmax.f32 %v591, 0.0
        %v638 = vmax.f32 %v596, 0.0
        %v639 = vmax.f32 %v599, 0.0
        %v640 = vmax.f32 %v604, 0.0
        %v641 = vmax.f32 %v607, 0.0
        %vm642 = vcmask 392192
        %643 = vst.msk [vmem:[#allocation2] sm:$0xff] %vm642, 0.0
        %644 = vst.msk [vmem:[#allocation2 + $0x8] sm:$0xff] %vm642, 0.0
        %vm645 = vcmask 386048
        %646 = vst.msk [vmem:[#allocation2 + $0x10] sm:$0x3] %vm645, 0.0
        %s647 = scalar_lea.vmem [#allocation2], 408
        %648 = vst.msk [vmem:[%s647] sm:$0xff] %vm642, 0.0
        %649 = vst.msk [vmem:[%s647 + $0x8] sm:$0xff] %vm642, 0.0
        %650 = vst.msk [vmem:[%s647 + $0x10] sm:$0x3] %vm645, 0.0
        %s651 = scalar_lea.vmem [#allocation2], 24
        %vm652 = vcmask 385024
        %653 = vst.msk [vmem:[%s651] sm:$0x1] %vm652, 0.0
        %654 = vst.msk [vmem:[%s651 + $0x18] sm:$0x1] %vm652, 0.0
        %655 = vst.msk [vmem:[%s651 + $0x30] sm:$0x1] %vm652, 0.0
        %656 = vst.msk [vmem:[%s651 + $0x48] sm:$0x1] %vm652, 0.0
        %657 = vst.msk [vmem:[%s651 + $0x60] sm:$0x1] %vm652, 0.0
        %658 = vst.msk [vmem:[%s651 + $0x78] sm:$0x1] %vm652, 0.0
        %659 = vst.msk [vmem:[%s651 + $0x90] sm:$0x1] %vm652, 0.0
        %660 = vst.msk [vmem:[%s651 + $0xa8] sm:$0x1] %vm652, 0.0
        %661 = vst.msk [vmem:[%s651 + $0xc0] sm:$0x1] %vm652, 0.0
        %662 = vst.msk [vmem:[%s651 + $0xd8] sm:$0x1] %vm652, 0.0
        %663 = vst.msk [vmem:[%s651 + $0xf0] sm:$0x1] %vm652, 0.0
        %664 = vst.msk [vmem:[%s651 + $0x108] sm:$0x1] %vm652, 0.0
        %665 = vst.msk [vmem:[%s651 + $0x120] sm:$0x1] %vm652, 0.0
        %666 = vst.msk [vmem:[%s651 + $0x138] sm:$0x1] %vm652, 0.0
        %667 = vst.msk [vmem:[%s651 + $0x150] sm:$0x1] %vm652, 0.0
        %668 = vst.msk [vmem:[%s651 + $0x168] sm:$0x1] %vm652, 0.0
        %669 = vst.msk [vmem:[%s651 + $0x11] sm:$0x1] %vm652, 0.0
        %670 = vst.msk [vmem:[%s651 + $0x29] sm:$0x1] %vm652, 0.0
        %671 = vst.msk [vmem:[%s651 + $0x41] sm:$0x1] %vm652, 0.0
        %672 = vst.msk [vmem:[%s651 + $0x59] sm:$0x1] %vm652, 0.0
        %673 = vst.msk [vmem:[%s651 + $0x71] sm:$0x1] %vm652, 0.0
        %674 = vst.msk [vmem:[%s651 + $0x89] sm:$0x1] %vm652, 0.0
        %675 = vst.msk [vmem:[%s651 + $0xa1] sm:$0x1] %vm652, 0.0
        %676 = vst.msk [vmem:[%s651 + $0xb9] sm:$0x1] %vm652, 0.0
        %677 = vst.msk [vmem:[%s651 + $0xd1] sm:$0x1] %vm652, 0.0
        %678 = vst.msk [vmem:[%s651 + $0xe9] sm:$0x1] %vm652, 0.0
        %679 = vst.msk [vmem:[%s651 + $0x101] sm:$0x1] %vm652, 0.0
        %680 = vst.msk [vmem:[%s651 + $0x119] sm:$0x1] %vm652, 0.0
        %681 = vst.msk [vmem:[%s651 + $0x131] sm:$0x1] %vm652, 0.0
        %682 = vst.msk [vmem:[%s651 + $0x149] sm:$0x1] %vm652, 0.0
        %683 = vst.msk [vmem:[%s651 + $0x161] sm:$0x1] %vm652, 0.0
        %684 = vst.msk [vmem:[%s651 + $0x179] sm:$0x1] %vm652, 0.0
        %685 = vst.msk [vmem:[%s651 + $0x1] sm:$0xff] %vm642, %v610
        %686 = vst.msk [vmem:[%s651 + $0x9] sm:$0xff] %vm642, %v611
        %687 = vst.msk [vmem:[%s651 + $0x19] sm:$0xff] %vm642, %v612
        %688 = vst.msk [vmem:[%s651 + $0x21] sm:$0xff] %vm642, %v613
        %689 = vst.msk [vmem:[%s651 + $0x31] sm:$0xff] %vm642, %v614
        %690 = vst.msk [vmem:[%s651 + $0x39] sm:$0xff] %vm642, %v615
        %691 = vst.msk [vmem:[%s651 + $0x49] sm:$0xff] %vm642, %v616
        %692 = vst.msk [vmem:[%s651 + $0x51] sm:$0xff] %vm642, %v617
        %693 = vst.msk [vmem:[%s651 + $0x61] sm:$0xff] %vm642, %v618
        %694 = vst.msk [vmem:[%s651 + $0x69] sm:$0xff] %vm642, %v619
        %695 = vst.msk [vmem:[%s651 + $0x79] sm:$0xff] %vm642, %v620
        %696 = vst.msk [vmem:[%s651 + $0x81] sm:$0xff] %vm642, %v621
        %697 = vst.msk [vmem:[%s651 + $0x91] sm:$0xff] %vm642, %v622
        %698 = vst.msk [vmem:[%s651 + $0x99] sm:$0xff] %vm642, %v623
        %699 = vst.msk [vmem:[%s651 + $0xa9] sm:$0xff] %vm642, %v624
        %700 = vst.msk [vmem:[%s651 + $0xb1] sm:$0xff] %vm642, %v625
        %701 = vst.msk [vmem:[%s651 + $0xc1] sm:$0xff] %vm642, %v626
        %702 = vst.msk [vmem:[%s651 + $0xc9] sm:$0xff] %vm642, %v627
        %703 = vst.msk [vmem:[%s651 + $0xd9] sm:$0xff] %vm642, %v628
        %704 = vst.msk [vmem:[%s651 + $0xe1] sm:$0xff] %vm642, %v629
        %705 = vst.msk [vmem:[%s651 + $0xf1] sm:$0xff] %vm642, %v630
        %706 = vst.msk [vmem:[%s651 + $0xf9] sm:$0xff] %vm642, %v631
        %707 = vst.msk [vmem:[%s651 + $0x109] sm:$0xff] %vm642, %v632
        %708 = vst.msk [vmem:[%s651 + $0x111] sm:$0xff] %vm642, %v633
        %709 = vst.msk [vmem:[%s651 + $0x121] sm:$0xff] %vm642, %v634
        %710 = vst.msk [vmem:[%s651 + $0x129] sm:$0xff] %vm642, %v635
        %711 = vst.msk [vmem:[%s651 + $0x139] sm:$0xff] %vm642, %v636
        %712 = vst.msk [vmem:[%s651 + $0x141] sm:$0xff] %vm642, %v637
        %713 = vst.msk [vmem:[%s651 + $0x151] sm:$0xff] %vm642, %v638
        %714 = vst.msk [vmem:[%s651 + $0x159] sm:$0xff] %vm642, %v639
        %715 = vst.msk [vmem:[%s651 + $0x169] sm:$0xff] %vm642, %v640
        %716 = vst.msk [vmem:[%s651 + $0x171] sm:$0xff] %vm642, %v641
        %v717 = vld [vmem:[#allocation7] sm:$0xff]
        %v718 = vld [vmem:[#allocation7 + $0x8] sm:$0x1]
        %v719 = vld [vmem:[#allocation2] sm:$0xff]
        %v720 = vld [vmem:[#allocation2 + $0x8] sm:$0xff]
        %v721 = vld [vmem:[#allocation2 + $0x18] sm:$0xff]
        %v722 = vld [vmem:[#allocation2 + $0x20] sm:$0xff]
        %v723 = vld [vmem:[#allocation2 + $0x30] sm:$0xff]
        %v724 = vld [vmem:[#allocation2 + $0x38] sm:$0xff]
        %v725 = vld [vmem:[#allocation2 + $0x48] sm:$0xff]
        %v726 = vld [vmem:[#allocation2 + $0x50] sm:$0xff]
        %v727 = vld [vmem:[#allocation2 + $0x60] sm:$0xff]
        %v728 = vld [vmem:[#allocation2 + $0x68] sm:$0xff]
        %v729 = vld [vmem:[#allocation2 + $0x78] sm:$0xff]
        %v730 = vld [vmem:[#allocation2 + $0x80] sm:$0xff]
        %v731 = vld [vmem:[#allocation2 + $0x90] sm:$0xff]
        %v732 = vld [vmem:[#allocation2 + $0x98] sm:$0xff]
        %v733 = vld [vmem:[#allocation2 + $0xa8] sm:$0xff]
        %v734 = vld [vmem:[#allocation2 + $0xb0] sm:$0xff]
        %v735 = vld [vmem:[#allocation2 + $0xc0] sm:$0xff]
        %v736 = vld [vmem:[#allocation2 + $0xc8] sm:$0xff]
        %v737 = vld [vmem:[#allocation2 + $0xd8] sm:$0xff]
        %v738 = vld [vmem:[#allocation2 + $0xe0] sm:$0xff]
        %v739 = vld [vmem:[#allocation2 + $0xf0] sm:$0xff]
        %v740 = vld [vmem:[#allocation2 + $0xf8] sm:$0xff]
        %v741 = vld [vmem:[#allocation2 + $0x108] sm:$0xff]
        %v742 = vld [vmem:[#allocation2 + $0x110] sm:$0xff]
        %v743 = vld [vmem:[#allocation2 + $0x120] sm:$0xff]
        %v744 = vld [vmem:[#allocation2 + $0x128] sm:$0xff]
        %v745 = vld [vmem:[#allocation2 + $0x138] sm:$0xff]
        %v746 = vld [vmem:[#allocation2 + $0x140] sm:$0xff]
        %v747 = vld [vmem:[#allocation2 + $0x150] sm:$0xff]
        %v748 = vld [vmem:[#allocation2 + $0x158] sm:$0xff]
        %v749 = vld [vmem:[#allocation2 + $0x168] sm:$0xff]
        %v750 = vld [vmem:[#allocation2 + $0x170] sm:$0xff]
        %v751 = vlaneseq
        %v752 = vshrl.u32 %v751, 7
        %v753 = vsub.s32 0, %v752
        %v754 = vrot.slane %v717, %v753
        %v755 = vmul.f32 %v719, %v754
        %v756 = vmul.f32 %v720, %v754
        %v757 = vmul.f32 %v721, %v754
        %v758 = vmul.f32 %v722, %v754
        %v759 = vmul.f32 %v723, %v754
        %v760 = vmul.f32 %v724, %v754
        %v761 = vmul.f32 %v725, %v754
        %v762 = vmul.f32 %v726, %v754
        %v763 = vmul.f32 %v727, %v754
        %v764 = vmul.f32 %v728, %v754
        %v765 = vmul.f32 %v729, %v754
        %v766 = vmul.f32 %v730, %v754
        %v767 = vmul.f32 %v731, %v754
        %v768 = vmul.f32 %v732, %v754
        %v769 = vmul.f32 %v733, %v754
        %v770 = vmul.f32 %v734, %v754
        %v771 = vmul.f32 %v735, %v754
        %v772 = vmul.f32 %v736, %v754
        %v773 = vmul.f32 %v737, %v754
        %v774 = vmul.f32 %v738, %v754
        %v775 = vmul.f32 %v739, %v754
        %v776 = vmul.f32 %v740, %v754
        %v777 = vmul.f32 %v741, %v754
        %v778 = vmul.f32 %v742, %v754
        %v779 = vmul.f32 %v743, %v754
        %v780 = vmul.f32 %v744, %v754
        %v781 = vmul.f32 %v745, %v754
        %v782 = vmul.f32 %v746, %v754
        %v783 = vmul.f32 %v747, %v754
        %v784 = vmul.f32 %v748, %v754
        %v785 = vmul.f32 %v749, %v754
        %v786 = vmul.f32 %v750, %v754
        %v787 = vadd.f32 %v755, 0.0
        %v788 = vadd.f32 %v756, 0.0
        %v789 = vadd.f32 %v757, 0.0
        %v790 = vadd.f32 %v758, 0.0
        %v791 = vadd.f32 %v759, 0.0
        %v792 = vadd.f32 %v760, 0.0
        %v793 = vadd.f32 %v761, 0.0
        %v794 = vadd.f32 %v762, 0.0
        %v795 = vadd.f32 %v763, 0.0
        %v796 = vadd.f32 %v764, 0.0
        %v797 = vadd.f32 %v765, 0.0
        %v798 = vadd.f32 %v766, 0.0
        %v799 = vadd.f32 %v767, 0.0
        %v800 = vadd.f32 %v768, 0.0
        %v801 = vadd.f32 %v769, 0.0
        %v802 = vadd.f32 %v770, 0.0
        %v803 = vadd.f32 %v771, 0.0
        %v804 = vadd.f32 %v772, 0.0
        %v805 = vadd.f32 %v773, 0.0
        %v806 = vadd.f32 %v774, 0.0
        %v807 = vadd.f32 %v775, 0.0
        %v808 = vadd.f32 %v776, 0.0
        %v809 = vadd.f32 %v777, 0.0
        %v810 = vadd.f32 %v778, 0.0
        %v811 = vadd.f32 %v779, 0.0
        %v812 = vadd.f32 %v780, 0.0
        %v813 = vadd.f32 %v781, 0.0
        %v814 = vadd.f32 %v782, 0.0
        %v815 = vadd.f32 %v783, 0.0
        %v816 = vadd.f32 %v784, 0.0
        %v817 = vadd.f32 %v785, 0.0
        %v818 = vadd.f32 %v786, 0.0
        %v819 = vld [vmem:[#allocation2 + $0x1] sm:$0xff]
        %v820 = vld [vmem:[#allocation2 + $0x9] sm:$0xff]
        %v821 = vld [vmem:[#allocation2 + $0x19] sm:$0xff]
        %v822 = vld [vmem:[#allocation2 + $0x21] sm:$0xff]
        %v823 = vld [vmem:[#allocation2 + $0x31] sm:$0xff]
        %v824 = vld [vmem:[#allocation2 + $0x39] sm:$0xff]
        %v825 = vld [vmem:[#allocation2 + $0x49] sm:$0xff]
        %v826 = vld [vmem:[#allocation2 + $0x51] sm:$0xff]
        %v827 = vld [vmem:[#allocation2 + $0x61] sm:$0xff]
        %v828 = vld [vmem:[#allocation2 + $0x69] sm:$0xff]
        %v829 = vld [vmem:[#allocation2 + $0x79] sm:$0xff]
        %v830 = vld [vmem:[#allocation2 + $0x81] sm:$0xff]
        %v831 = vld [vmem:[#allocation2 + $0x91] sm:$0xff]
        %v832 = vld [vmem:[#allocation2 + $0x99] sm:$0xff]
        %v833 = vld [vmem:[#allocation2 + $0xa9] sm:$0xff]
        %v834 = vld [vmem:[#allocation2 + $0xb1] sm:$0xff]
        %v835 = vld [vmem:[#allocation2 + $0xc1] sm:$0xff]
        %v836 = vld [vmem:[#allocation2 + $0xc9] sm:$0xff]
        %v837 = vld [vmem:[#allocation2 + $0xd9] sm:$0xff]
        %v838 = vld [vmem:[#allocation2 + $0xe1] sm:$0xff]
        %v839 = vld [vmem:[#allocation2 + $0xf1] sm:$0xff]
        %v840 = vld [vmem:[#allocation2 + $0xf9] sm:$0xff]
        %v841 = vld [vmem:[#allocation2 + $0x109] sm:$0xff]
        %v842 = vld [vmem:[#allocation2 + $0x111] sm:$0xff]
        %v843 = vld [vmem:[#allocation2 + $0x121] sm:$0xff]
        %v844 = vld [vmem:[#allocation2 + $0x129] sm:$0xff]
        %v845 = vld [vmem:[#allocation2 + $0x139] sm:$0xff]
        %v846 = vld [vmem:[#allocation2 + $0x141] sm:$0xff]
        %v847 = vld [vmem:[#allocation2 + $0x151] sm:$0xff]
        %v848 = vld [vmem:[#allocation2 + $0x159] sm:$0xff]
        %v849 = vld [vmem:[#allocation2 + $0x169] sm:$0xff]
        %v850 = vld [vmem:[#allocation2 + $0x171] sm:$0xff]
        %v851 = vlaneseq
        %v852 = vshrl.u32 %v851, 7
        %v853 = vsub.s32 1, %v852
        %v854 = vrot.slane %v717, %v853
        %v855 = vmul.f32 %v819, %v854
        %v856 = vmul.f32 %v820, %v854
        %v857 = vmul.f32 %v821, %v854
        %v858 = vmul.f32 %v822, %v854
        %v859 = vmul.f32 %v823, %v854
        %v860 = vmul.f32 %v824, %v854
        %v861 = vmul.f32 %v825, %v854
        %v862 = vmul.f32 %v826, %v854
        %v863 = vmul.f32 %v827, %v854
        %v864 = vmul.f32 %v828, %v854
        %v865 = vmul.f32 %v829, %v854
        %v866 = vmul.f32 %v830, %v854
        %v867 = vmul.f32 %v831, %v854
        %v868 = vmul.f32 %v832, %v854
        %v869 = vmul.f32 %v833, %v854
        %v870 = vmul.f32 %v834, %v854
        %v871 = vmul.f32 %v835, %v854
        %v872 = vmul.f32 %v836, %v854
        %v873 = vmul.f32 %v837, %v854
        %v874 = vmul.f32 %v838, %v854
        %v875 = vmul.f32 %v839, %v854
        %v876 = vmul.f32 %v840, %v854
        %v877 = vmul.f32 %v841, %v854
        %v878 = vmul.f32 %v842, %v854
        %v879 = vmul.f32 %v843, %v854
        %v880 = vmul.f32 %v844, %v854
        %v881 = vmul.f32 %v845, %v854
        %v882 = vmul.f32 %v846, %v854
        %v883 = vmul.f32 %v847, %v854
        %v884 = vmul.f32 %v848, %v854
        %v885 = vmul.f32 %v849, %v854
        %v886 = vmul.f32 %v850, %v854
        %v887 = vadd.f32 %v787, %v855
        %v888 = vadd.f32 %v788, %v856
        %v889 = vadd.f32 %v789, %v857
        %v890 = vadd.f32 %v790, %v858
        %v891 = vadd.f32 %v791, %v859
        %v892 = vadd.f32 %v792, %v860
        %v893 = vadd.f32 %v793, %v861
        %v894 = vadd.f32 %v794, %v862
        %v895 = vadd.f32 %v795, %v863
        %v896 = vadd.f32 %v796, %v864
        %v897 = vadd.f32 %v797, %v865
        %v898 = vadd.f32 %v798, %v866
        %v899 = vadd.f32 %v799, %v867
        %v900 = vadd.f32 %v800, %v868
        %v901 = vadd.f32 %v801, %v869
        %v902 = vadd.f32 %v802, %v870
        %v903 = vadd.f32 %v803, %v871
        %v904 = vadd.f32 %v804, %v872
        %v905 = vadd.f32 %v805, %v873
        %v906 = vadd.f32 %v806, %v874
        %v907 = vadd.f32 %v807, %v875
        %v908 = vadd.f32 %v808, %v876
        %v909 = vadd.f32 %v809, %v877
        %v910 = vadd.f32 %v810, %v878
        %v911 = vadd.f32 %v811, %v879
        %v912 = vadd.f32 %v812, %v880
        %v913 = vadd.f32 %v813, %v881
        %v914 = vadd.f32 %v814, %v882
        %v915 = vadd.f32 %v815, %v883
        %v916 = vadd.f32 %v816, %v884
        %v917 = vadd.f32 %v817, %v885
        %v918 = vadd.f32 %v818, %v886
        %v919 = vld [vmem:[#allocation2 + $0x2] sm:$0xff]
        %v920 = vld [vmem:[#allocation2 + $0xa] sm:$0xff]
        %v921 = vld [vmem:[#allocation2 + $0x1a] sm:$0xff]
        %v922 = vld [vmem:[#allocation2 + $0x22] sm:$0xff]
        %v923 = vld [vmem:[#allocation2 + $0x32] sm:$0xff]
        %v924 = vld [vmem:[#allocation2 + $0x3a] sm:$0xff]
        %v925 = vld [vmem:[#allocation2 + $0x4a] sm:$0xff]
        %v926 = vld [vmem:[#allocation2 + $0x52] sm:$0xff]
        %v927 = vld [vmem:[#allocation2 + $0x62] sm:$0xff]
        %v928 = vld [vmem:[#allocation2 + $0x6a] sm:$0xff]
        %v929 = vld [vmem:[#allocation2 + $0x7a] sm:$0xff]
        %v930 = vld [vmem:[#allocation2 + $0x82] sm:$0xff]
        %v931 = vld [vmem:[#allocation2 + $0x92] sm:$0xff]
        %v932 = vld [vmem:[#allocation2 + $0x9a] sm:$0xff]
        %v933 = vld [vmem:[#allocation2 + $0xaa] sm:$0xff]
        %v934 = vld [vmem:[#allocation2 + $0xb2] sm:$0xff]
        %v935 = vld [vmem:[#allocation2 + $0xc2] sm:$0xff]
        %v936 = vld [vmem:[#allocation2 + $0xca] sm:$0xff]
        %v937 = vld [vmem:[#allocation2 + $0xda] sm:$0xff]
        %v938 = vld [vmem:[#allocation2 + $0xe2] sm:$0xff]
        %v939 = vld [vmem:[#allocation2 + $0xf2] sm:$0xff]
        %v940 = vld [vmem:[#allocation2 + $0xfa] sm:$0xff]
        %v941 = vld [vmem:[#allocation2 + $0x10a] sm:$0xff]
        %v942 = vld [vmem:[#allocation2 + $0x112] sm:$0xff]
        %v943 = vld [vmem:[#allocation2 + $0x122] sm:$0xff]
        %v944 = vld [vmem:[#allocation2 + $0x12a] sm:$0xff]
        %v945 = vld [vmem:[#allocation2 + $0x13a] sm:$0xff]
        %v946 = vld [vmem:[#allocation2 + $0x142] sm:$0xff]
        %v947 = vld [vmem:[#allocation2 + $0x152] sm:$0xff]
        %v948 = vld [vmem:[#allocation2 + $0x15a] sm:$0xff]
        %v949 = vld [vmem:[#allocation2 + $0x16a] sm:$0xff]
        %v950 = vld [vmem:[#allocation2 + $0x172] sm:$0xff]
        %v951 = vlaneseq
        %v952 = vshrl.u32 %v951, 7
        %v953 = vsub.s32 2, %v952
        %v954 = vrot.slane %v717, %v953
        %v955 = vmul.f32 %v919, %v954
        %v956 = vmul.f32 %v920, %v954
        %v957 = vmul.f32 %v921, %v954
        %v958 = vmul.f32 %v922, %v954
        %v959 = vmul.f32 %v923, %v954
        %v960 = vmul.f32 %v924, %v954
        %v961 = vmul.f32 %v925, %v954
        %v962 = vmul.f32 %v926, %v954
        %v963 = vmul.f32 %v927, %v954
        %v964 = vmul.f32 %v928, %v954
        %v965 = vmul.f32 %v929, %v954
        %v966 = vmul.f32 %v930, %v954
        %v967 = vmul.f32 %v931, %v954
        %v968 = vmul.f32 %v932, %v954
        %v969 = vmul.f32 %v933, %v954
        %v970 = vmul.f32 %v934, %v954
        %v971 = vmul.f32 %v935, %v954
        %v972 = vmul.f32 %v936, %v954
        %v973 = vmul.f32 %v937, %v954
        %v974 = vmul.f32 %v938, %v954
        %v975 = vmul.f32 %v939, %v954
        %v976 = vmul.f32 %v940, %v954
        %v977 = vmul.f32 %v941, %v954
        %v978 = vmul.f32 %v942, %v954
        %v979 = vmul.f32 %v943, %v954
        %v980 = vmul.f32 %v944, %v954
        %v981 = vmul.f32 %v945, %v954
        %v982 = vmul.f32 %v946, %v954
        %v983 = vmul.f32 %v947, %v954
        %v984 = vmul.f32 %v948, %v954
        %v985 = vmul.f32 %v949, %v954
        %v986 = vmul.f32 %v950, %v954
        %v987 = vadd.f32 %v887, %v955
        %v988 = vadd.f32 %v888, %v956
        %v989 = vadd.f32 %v889, %v957
        %v990 = vadd.f32 %v890, %v958
        %v991 = vadd.f32 %v891, %v959
        %v992 = vadd.f32 %v892, %v960
        %v993 = vadd.f32 %v893, %v961
        %v994 = vadd.f32 %v894, %v962
        %v995 = vadd.f32 %v895, %v963
        %v996 = vadd.f32 %v896, %v964
        %v997 = vadd.f32 %v897, %v965
        %v998 = vadd.f32 %v898, %v966
        %v999 = vadd.f32 %v899, %v967
        %v1000 = vadd.f32 %v900, %v968
        %v1001 = vadd.f32 %v901, %v969
        %v1002 = vadd.f32 %v902, %v970
        %v1003 = vadd.f32 %v903, %v971
        %v1004 = vadd.f32 %v904, %v972
        %v1005 = vadd.f32 %v905, %v973
        %v1006 = vadd.f32 %v906, %v974
        %v1007 = vadd.f32 %v907, %v975
        %v1008 = vadd.f32 %v908, %v976
        %v1009 = vadd.f32 %v909, %v977
        %v1010 = vadd.f32 %v910, %v978
        %v1011 = vadd.f32 %v911, %v979
        %v1012 = vadd.f32 %v912, %v980
        %v1013 = vadd.f32 %v913, %v981
        %v1014 = vadd.f32 %v914, %v982
        %v1015 = vadd.f32 %v915, %v983
        %v1016 = vadd.f32 %v916, %v984
        %v1017 = vadd.f32 %v917, %v985
        %v1018 = vadd.f32 %v918, %v986
        %v1019 = vld [vmem:[%s651] sm:$0xff]
        %v1020 = vld [vmem:[%s651 + $0x8] sm:$0xff]
        %v1021 = vld [vmem:[%s651 + $0x18] sm:$0xff]
        %v1022 = vld [vmem:[%s651 + $0x20] sm:$0xff]
        %v1023 = vld [vmem:[%s651 + $0x30] sm:$0xff]
        %v1024 = vld [vmem:[%s651 + $0x38] sm:$0xff]
        %v1025 = vld [vmem:[%s651 + $0x48] sm:$0xff]
        %v1026 = vld [vmem:[%s651 + $0x50] sm:$0xff]
        %v1027 = vld [vmem:[%s651 + $0x60] sm:$0xff]
        %v1028 = vld [vmem:[%s651 + $0x68] sm:$0xff]
        %v1029 = vld [vmem:[%s651 + $0x78] sm:$0xff]
        %v1030 = vld [vmem:[%s651 + $0x80] sm:$0xff]
        %v1031 = vld [vmem:[%s651 + $0x90] sm:$0xff]
        %v1032 = vld [vmem:[%s651 + $0x98] sm:$0xff]
        %v1033 = vld [vmem:[%s651 + $0xa8] sm:$0xff]
        %v1034 = vld [vmem:[%s651 + $0xb0] sm:$0xff]
        %v1035 = vld [vmem:[%s651 + $0xc0] sm:$0xff]
        %v1036 = vld [vmem:[%s651 + $0xc8] sm:$0xff]
        %v1037 = vld [vmem:[%s651 + $0xd8] sm:$0xff]
        %v1038 = vld [vmem:[%s651 + $0xe0] sm:$0xff]
        %v1039 = vld [vmem:[%s651 + $0xf0] sm:$0xff]
        %v1040 = vld [vmem:[%s651 + $0xf8] sm:$0xff]
        %v1041 = vld [vmem:[%s651 + $0x108] sm:$0xff]
        %v1042 = vld [vmem:[%s651 + $0x110] sm:$0xff]
        %v1043 = vld [vmem:[%s651 + $0x120] sm:$0xff]
        %v1044 = vld [vmem:[%s651 + $0x128] sm:$0xff]
        %v1045 = vld [vmem:[%s651 + $0x138] sm:$0xff]
        %v1046 = vld [vmem:[%s651 + $0x140] sm:$0xff]
        %v1047 = vld [vmem:[%s651 + $0x150] sm:$0xff]
        %v1048 = vld [vmem:[%s651 + $0x158] sm:$0xff]
        %v1049 = vld [vmem:[%s651 + $0x168] sm:$0xff]
        %v1050 = vld [vmem:[%s651 + $0x170] sm:$0xff]
        %v1051 = vlaneseq
        %v1052 = vshrl.u32 %v1051, 7
        %v1053 = vsub.s32 3, %v1052
        %v1054 = vrot.slane %v717, %v1053
        %v1055 = vmul.f32 %v1019, %v1054
        %v1056 = vmul.f32 %v1020, %v1054
        %v1057 = vmul.f32 %v1021, %v1054
        %v1058 = vmul.f32 %v1022, %v1054
        %v1059 = vmul.f32 %v1023, %v1054
        %v1060 = vmul.f32 %v1024, %v1054
        %v1061 = vmul.f32 %v1025, %v1054
        %v1062 = vmul.f32 %v1026, %v1054
        %v1063 = vmul.f32 %v1027, %v1054
        %v1064 = vmul.f32 %v1028, %v1054
        %v1065 = vmul.f32 %v1029, %v1054
        %v1066 = vmul.f32 %v1030, %v1054
        %v1067 = vmul.f32 %v1031, %v1054
        %v1068 = vmul.f32 %v1032, %v1054
        %v1069 = vmul.f32 %v1033, %v1054
        %v1070 = vmul.f32 %v1034, %v1054
        %v1071 = vmul.f32 %v1035, %v1054
        %v1072 = vmul.f32 %v1036, %v1054
        %v1073 = vmul.f32 %v1037, %v1054
        %v1074 = vmul.f32 %v1038, %v1054
        %v1075 = vmul.f32 %v1039, %v1054
        %v1076 = vmul.f32 %v1040, %v1054
        %v1077 = vmul.f32 %v1041, %v1054
        %v1078 = vmul.f32 %v1042, %v1054
        %v1079 = vmul.f32 %v1043, %v1054
        %v1080 = vmul.f32 %v1044, %v1054
        %v1081 = vmul.f32 %v1045, %v1054
        %v1082 = vmul.f32 %v1046, %v1054
        %v1083 = vmul.f32 %v1047, %v1054
        %v1084 = vmul.f32 %v1048, %v1054
        %v1085 = vmul.f32 %v1049, %v1054
        %v1086 = vmul.f32 %v1050, %v1054
        %v1087 = vadd.f32 %v987, %v1055
        %v1088 = vadd.f32 %v988, %v1056
        %v1089 = vadd.f32 %v989, %v1057
        %v1090 = vadd.f32 %v990, %v1058
        %v1091 = vadd.f32 %v991, %v1059
        %v1092 = vadd.f32 %v992, %v1060
        %v1093 = vadd.f32 %v993, %v1061
        %v1094 = vadd.f32 %v994, %v1062
        %v1095 = vadd.f32 %v995, %v1063
        %v1096 = vadd.f32 %v996, %v1064
        %v1097 = vadd.f32 %v997, %v1065
        %v1098 = vadd.f32 %v998, %v1066
        %v1099 = vadd.f32 %v999, %v1067
        %v1100 = vadd.f32 %v1000, %v1068
        %v1101 = vadd.f32 %v1001, %v1069
        %v1102 = vadd.f32 %v1002, %v1070
        %v1103 = vadd.f32 %v1003, %v1071
        %v1104 = vadd.f32 %v1004, %v1072
        %v1105 = vadd.f32 %v1005, %v1073
        %v1106 = vadd.f32 %v1006, %v1074
        %v1107 = vadd.f32 %v1007, %v1075
        %v1108 = vadd.f32 %v1008, %v1076
        %v1109 = vadd.f32 %v1009, %v1077
        %v1110 = vadd.f32 %v1010, %v1078
        %v1111 = vadd.f32 %v1011, %v1079
        %v1112 = vadd.f32 %v1012, %v1080
        %v1113 = vadd.f32 %v1013, %v1081
        %v1114 = vadd.f32 %v1014, %v1082
        %v1115 = vadd.f32 %v1015, %v1083
        %v1116 = vadd.f32 %v1016, %v1084
        %v1117 = vadd.f32 %v1017, %v1085
        %v1118 = vadd.f32 %v1018, %v1086
        %v1119 = vld [vmem:[%s651 + $0x1] sm:$0xff]
        %v1120 = vld [vmem:[%s651 + $0x9] sm:$0xff]
        %v1121 = vld [vmem:[%s651 + $0x19] sm:$0xff]
        %v1122 = vld [vmem:[%s651 + $0x21] sm:$0xff]
        %v1123 = vld [vmem:[%s651 + $0x31] sm:$0xff]
        %v1124 = vld [vmem:[%s651 + $0x39] sm:$0xff]
        %v1125 = vld [vmem:[%s651 + $0x49] sm:$0xff]
        %v1126 = vld [vmem:[%s651 + $0x51] sm:$0xff]
        %v1127 = vld [vmem:[%s651 + $0x61] sm:$0xff]
        %v1128 = vld [vmem:[%s651 + $0x69] sm:$0xff]
        %v1129 = vld [vmem:[%s651 + $0x79] sm:$0xff]
        %v1130 = vld [vmem:[%s651 + $0x81] sm:$0xff]
        %v1131 = vld [vmem:[%s651 + $0x91] sm:$0xff]
        %v1132 = vld [vmem:[%s651 + $0x99] sm:$0xff]
        %v1133 = vld [vmem:[%s651 + $0xa9] sm:$0xff]
        %v1134 = vld [vmem:[%s651 + $0xb1] sm:$0xff]
        %v1135 = vld [vmem:[%s651 + $0xc1] sm:$0xff]
        %v1136 = vld [vmem:[%s651 + $0xc9] sm:$0xff]
        %v1137 = vld [vmem:[%s651 + $0xd9] sm:$0xff]
        %v1138 = vld [vmem:[%s651 + $0xe1] sm:$0xff]
        %v1139 = vld [vmem:[%s651 + $0xf1] sm:$0xff]
        %v1140 = vld [vmem:[%s651 + $0xf9] sm:$0xff]
        %v1141 = vld [vmem:[%s651 + $0x109] sm:$0xff]
        %v1142 = vld [vmem:[%s651 + $0x111] sm:$0xff]
        %v1143 = vld [vmem:[%s651 + $0x121] sm:$0xff]
        %v1144 = vld [vmem:[%s651 + $0x129] sm:$0xff]
        %v1145 = vld [vmem:[%s651 + $0x139] sm:$0xff]
        %v1146 = vld [vmem:[%s651 + $0x141] sm:$0xff]
        %v1147 = vld [vmem:[%s651 + $0x151] sm:$0xff]
        %v1148 = vld [vmem:[%s651 + $0x159] sm:$0xff]
        %v1149 = vld [vmem:[%s651 + $0x169] sm:$0xff]
        %v1150 = vld [vmem:[%s651 + $0x171] sm:$0xff]
        %v1151 = vlaneseq
        %v1152 = vshrl.u32 %v1151, 7
        %v1153 = vsub.s32 4, %v1152
        %v1154 = vrot.slane %v717, %v1153
        %v1155 = vmul.f32 %v1119, %v1154
        %v1156 = vmul.f32 %v1120, %v1154
        %v1157 = vmul.f32 %v1121, %v1154
        %v1158 = vmul.f32 %v1122, %v1154
        %v1159 = vmul.f32 %v1123, %v1154
        %v1160 = vmul.f32 %v1124, %v1154
        %v1161 = vmul.f32 %v1125, %v1154
        %v1162 = vmul.f32 %v1126, %v1154
        %v1163 = vmul.f32 %v1127, %v1154
        %v1164 = vmul.f32 %v1128, %v1154
        %v1165 = vmul.f32 %v1129, %v1154
        %v1166 = vmul.f32 %v1130, %v1154
        %v1167 = vmul.f32 %v1131, %v1154
        %v1168 = vmul.f32 %v1132, %v1154
        %v1169 = vmul.f32 %v1133, %v1154
        %v1170 = vmul.f32 %v1134, %v1154
        %v1171 = vmul.f32 %v1135, %v1154
        %v1172 = vmul.f32 %v1136, %v1154
        %v1173 = vmul.f32 %v1137, %v1154
        %v1174 = vmul.f32 %v1138, %v1154
        %v1175 = vmul.f32 %v1139, %v1154
        %v1176 = vmul.f32 %v1140, %v1154
        %v1177 = vmul.f32 %v1141, %v1154
        %v1178 = vmul.f32 %v1142, %v1154
        %v1179 = vmul.f32 %v1143, %v1154
        %v1180 = vmul.f32 %v1144, %v1154
        %v1181 = vmul.f32 %v1145, %v1154
        %v1182 = vmul.f32 %v1146, %v1154
        %v1183 = vmul.f32 %v1147, %v1154
        %v1184 = vmul.f32 %v1148, %v1154
        %v1185 = vmul.f32 %v1149, %v1154
        %v1186 = vmul.f32 %v1150, %v1154
        %v1187 = vadd.f32 %v1087, %v1155
        %v1188 = vadd.f32 %v1088, %v1156
        %v1189 = vadd.f32 %v1089, %v1157
        %v1190 = vadd.f32 %v1090, %v1158
        %v1191 = vadd.f32 %v1091, %v1159
        %v1192 = vadd.f32 %v1092, %v1160
        %v1193 = vadd.f32 %v1093, %v1161
        %v1194 = vadd.f32 %v1094, %v1162
        %v1195 = vadd.f32 %v1095, %v1163
        %v1196 = vadd.f32 %v1096, %v1164
        %v1197 = vadd.f32 %v1097, %v1165
        %v1198 = vadd.f32 %v1098, %v1166
        %v1199 = vadd.f32 %v1099, %v1167
        %v1200 = vadd.f32 %v1100, %v1168
        %v1201 = vadd.f32 %v1101, %v1169
        %v1202 = vadd.f32 %v1102, %v1170
        %v1203 = vadd.f32 %v1103, %v1171
        %v1204 = vadd.f32 %v1104, %v1172
        %v1205 = vadd.f32 %v1105, %v1173
        %v1206 = vadd.f32 %v1106, %v1174
        %v1207 = vadd.f32 %v1107, %v1175
        %v1208 = vadd.f32 %v1108, %v1176
        %v1209 = vadd.f32 %v1109, %v1177
        %v1210 = vadd.f32 %v1110, %v1178
        %v1211 = vadd.f32 %v1111, %v1179
        %v1212 = vadd.f32 %v1112, %v1180
        %v1213 = vadd.f32 %v1113, %v1181
        %v1214 = vadd.f32 %v1114, %v1182
        %v1215 = vadd.f32 %v1115, %v1183
        %v1216 = vadd.f32 %v1116, %v1184
        %v1217 = vadd.f32 %v1117, %v1185
        %v1218 = vadd.f32 %v1118, %v1186
        %v1219 = vld [vmem:[%s651 + $0x2] sm:$0xff]
        %v1220 = vld [vmem:[%s651 + $0xa] sm:$0xff]
        %v1221 = vld [vmem:[%s651 + $0x1a] sm:$0xff]
        %v1222 = vld [vmem:[%s651 + $0x22] sm:$0xff]
        %v1223 = vld [vmem:[%s651 + $0x32] sm:$0xff]
        %v1224 = vld [vmem:[%s651 + $0x3a] sm:$0xff]
        %v1225 = vld [vmem:[%s651 + $0x4a] sm:$0xff]
        %v1226 = vld [vmem:[%s651 + $0x52] sm:$0xff]
        %v1227 = vld [vmem:[%s651 + $0x62] sm:$0xff]
        %v1228 = vld [vmem:[%s651 + $0x6a] sm:$0xff]
        %v1229 = vld [vmem:[%s651 + $0x7a] sm:$0xff]
        %v1230 = vld [vmem:[%s651 + $0x82] sm:$0xff]
        %v1231 = vld [vmem:[%s651 + $0x92] sm:$0xff]
        %v1232 = vld [vmem:[%s651 + $0x9a] sm:$0xff]
        %v1233 = vld [vmem:[%s651 + $0xaa] sm:$0xff]
        %v1234 = vld [vmem:[%s651 + $0xb2] sm:$0xff]
        %v1235 = vld [vmem:[%s651 + $0xc2] sm:$0xff]
        %v1236 = vld [vmem:[%s651 + $0xca] sm:$0xff]
        %v1237 = vld [vmem:[%s651 + $0xda] sm:$0xff]
        %v1238 = vld [vmem:[%s651 + $0xe2] sm:$0xff]
        %v1239 = vld [vmem:[%s651 + $0xf2] sm:$0xff]
        %v1240 = vld [vmem:[%s651 + $0xfa] sm:$0xff]
        %v1241 = vld [vmem:[%s651 + $0x10a] sm:$0xff]
        %v1242 = vld [vmem:[%s651 + $0x112] sm:$0xff]
        %v1243 = vld [vmem:[%s651 + $0x122] sm:$0xff]
        %v1244 = vld [vmem:[%s651 + $0x12a] sm:$0xff]
        %v1245 = vld [vmem:[%s651 + $0x13a] sm:$0xff]
        %v1246 = vld [vmem:[%s651 + $0x142] sm:$0xff]
        %v1247 = vld [vmem:[%s651 + $0x152] sm:$0xff]
        %v1248 = vld [vmem:[%s651 + $0x15a] sm:$0xff]
        %v1249 = vld [vmem:[%s651 + $0x16a] sm:$0xff]
        %v1250 = vld [vmem:[%s651 + $0x172] sm:$0xff]
        %v1251 = vlaneseq
        %v1252 = vshrl.u32 %v1251, 7
        %v1253 = vsub.s32 5, %v1252
        %v1254 = vrot.slane %v717, %v1253
        %v1255 = vmul.f32 %v1219, %v1254
        %v1256 = vmul.f32 %v1220, %v1254
        %v1257 = vmul.f32 %v1221, %v1254
        %v1258 = vmul.f32 %v1222, %v1254
        %v1259 = vmul.f32 %v1223, %v1254
        %v1260 = vmul.f32 %v1224, %v1254
        %v1261 = vmul.f32 %v1225, %v1254
        %v1262 = vmul.f32 %v1226, %v1254
        %v1263 = vmul.f32 %v1227, %v1254
        %v1264 = vmul.f32 %v1228, %v1254
        %v1265 = vmul.f32 %v1229, %v1254
        %v1266 = vmul.f32 %v1230, %v1254
        %v1267 = vmul.f32 %v1231, %v1254
        %v1268 = vmul.f32 %v1232, %v1254
        %v1269 = vmul.f32 %v1233, %v1254
        %v1270 = vmul.f32 %v1234, %v1254
        %v1271 = vmul.f32 %v1235, %v1254
        %v1272 = vmul.f32 %v1236, %v1254
        %v1273 = vmul.f32 %v1237, %v1254
        %v1274 = vmul.f32 %v1238, %v1254
        %v1275 = vmul.f32 %v1239, %v1254
        %v1276 = vmul.f32 %v1240, %v1254
        %v1277 = vmul.f32 %v1241, %v1254
        %v1278 = vmul.f32 %v1242, %v1254
        %v1279 = vmul.f32 %v1243, %v1254
        %v1280 = vmul.f32 %v1244, %v1254
        %v1281 = vmul.f32 %v1245, %v1254
        %v1282 = vmul.f32 %v1246, %v1254
        %v1283 = vmul.f32 %v1247, %v1254
        %v1284 = vmul.f32 %v1248, %v1254
        %v1285 = vmul.f32 %v1249, %v1254
        %v1286 = vmul.f32 %v1250, %v1254
        %v1287 = vadd.f32 %v1187, %v1255
        %v1288 = vadd.f32 %v1188, %v1256
        %v1289 = vadd.f32 %v1189, %v1257
        %v1290 = vadd.f32 %v1190, %v1258
        %v1291 = vadd.f32 %v1191, %v1259
        %v1292 = vadd.f32 %v1192, %v1260
        %v1293 = vadd.f32 %v1193, %v1261
        %v1294 = vadd.f32 %v1194, %v1262
        %v1295 = vadd.f32 %v1195, %v1263
        %v1296 = vadd.f32 %v1196, %v1264
        %v1297 = vadd.f32 %v1197, %v1265
        %v1298 = vadd.f32 %v1198, %v1266
        %v1299 = vadd.f32 %v1199, %v1267
        %v1300 = vadd.f32 %v1200, %v1268
        %v1301 = vadd.f32 %v1201, %v1269
        %v1302 = vadd.f32 %v1202, %v1270
        %v1303 = vadd.f32 %v1203, %v1271
        %v1304 = vadd.f32 %v1204, %v1272
        %v1305 = vadd.f32 %v1205, %v1273
        %v1306 = vadd.f32 %v1206, %v1274
        %v1307 = vadd.f32 %v1207, %v1275
        %v1308 = vadd.f32 %v1208, %v1276
        %v1309 = vadd.f32 %v1209, %v1277
        %v1310 = vadd.f32 %v1210, %v1278
        %v1311 = vadd.f32 %v1211, %v1279
        %v1312 = vadd.f32 %v1212, %v1280
        %v1313 = vadd.f32 %v1213, %v1281
        %v1314 = vadd.f32 %v1214, %v1282
        %v1315 = vadd.f32 %v1215, %v1283
        %v1316 = vadd.f32 %v1216, %v1284
        %v1317 = vadd.f32 %v1217, %v1285
        %v1318 = vadd.f32 %v1218, %v1286
        %s1319 = scalar_lea.vmem [#allocation2], 48
        %v1320 = vld [vmem:[%s1319] sm:$0xff]
        %v1321 = vld [vmem:[%s1319 + $0x8] sm:$0xff]
        %v1322 = vld [vmem:[%s1319 + $0x18] sm:$0xff]
        %v1323 = vld [vmem:[%s1319 + $0x20] sm:$0xff]
        %v1324 = vld [vmem:[%s1319 + $0x30] sm:$0xff]
        %v1325 = vld [vmem:[%s1319 + $0x38] sm:$0xff]
        %v1326 = vld [vmem:[%s1319 + $0x48] sm:$0xff]
        %v1327 = vld [vmem:[%s1319 + $0x50] sm:$0xff]
        %v1328 = vld [vmem:[%s1319 + $0x60] sm:$0xff]
        %v1329 = vld [vmem:[%s1319 + $0x68] sm:$0xff]
        %v1330 = vld [vmem:[%s1319 + $0x78] sm:$0xff]
        %v1331 = vld [vmem:[%s1319 + $0x80] sm:$0xff]
        %v1332 = vld [vmem:[%s1319 + $0x90] sm:$0xff]
        %v1333 = vld [vmem:[%s1319 + $0x98] sm:$0xff]
        %v1334 = vld [vmem:[%s1319 + $0xa8] sm:$0xff]
        %v1335 = vld [vmem:[%s1319 + $0xb0] sm:$0xff]
        %v1336 = vld [vmem:[%s1319 + $0xc0] sm:$0xff]
        %v1337 = vld [vmem:[%s1319 + $0xc8] sm:$0xff]
        %v1338 = vld [vmem:[%s1319 + $0xd8] sm:$0xff]
        %v1339 = vld [vmem:[%s1319 + $0xe0] sm:$0xff]
        %v1340 = vld [vmem:[%s1319 + $0xf0] sm:$0xff]
        %v1341 = vld [vmem:[%s1319 + $0xf8] sm:$0xff]
        %v1342 = vld [vmem:[%s1319 + $0x108] sm:$0xff]
        %v1343 = vld [vmem:[%s1319 + $0x110] sm:$0xff]
        %v1344 = vld [vmem:[%s1319 + $0x120] sm:$0xff]
        %v1345 = vld [vmem:[%s1319 + $0x128] sm:$0xff]
        %v1346 = vld [vmem:[%s1319 + $0x138] sm:$0xff]
        %v1347 = vld [vmem:[%s1319 + $0x140] sm:$0xff]
        %v1348 = vld [vmem:[%s1319 + $0x150] sm:$0xff]
        %v1349 = vld [vmem:[%s1319 + $0x158] sm:$0xff]
        %v1350 = vld [vmem:[%s1319 + $0x168] sm:$0xff]
        %v1351 = vld [vmem:[%s1319 + $0x170] sm:$0xff]
        %v1352 = vlaneseq
        %v1353 = vshrl.u32 %v1352, 7
        %v1354 = vsub.s32 6, %v1353
        %v1355 = vrot.slane %v717, %v1354
        %v1356 = vmul.f32 %v1320, %v1355
        %v1357 = vmul.f32 %v1321, %v1355
        %v1358 = vmul.f32 %v1322, %v1355
        %v1359 = vmul.f32 %v1323, %v1355
        %v1360 = vmul.f32 %v1324, %v1355
        %v1361 = vmul.f32 %v1325, %v1355
        %v1362 = vmul.f32 %v1326, %v1355
        %v1363 = vmul.f32 %v1327, %v1355
        %v1364 = vmul.f32 %v1328, %v1355
        %v1365 = vmul.f32 %v1329, %v1355
        %v1366 = vmul.f32 %v1330, %v1355
        %v1367 = vmul.f32 %v1331, %v1355
        %v1368 = vmul.f32 %v1332, %v1355
        %v1369 = vmul.f32 %v1333, %v1355
        %v1370 = vmul.f32 %v1334, %v1355
        %v1371 = vmul.f32 %v1335, %v1355
        %v1372 = vmul.f32 %v1336, %v1355
        %v1373 = vmul.f32 %v1337, %v1355
        %v1374 = vmul.f32 %v1338, %v1355
        %v1375 = vmul.f32 %v1339, %v1355
        %v1376 = vmul.f32 %v1340, %v1355
        %v1377 = vmul.f32 %v1341, %v1355
        %v1378 = vmul.f32 %v1342, %v1355
        %v1379 = vmul.f32 %v1343, %v1355
        %v1380 = vmul.f32 %v1344, %v1355
        %v1381 = vmul.f32 %v1345, %v1355
        %v1382 = vmul.f32 %v1346, %v1355
        %v1383 = vmul.f32 %v1347, %v1355
        %v1384 = vmul.f32 %v1348, %v1355
        %v1385 = vmul.f32 %v1349, %v1355
        %v1386 = vmul.f32 %v1350, %v1355
        %v1387 = vmul.f32 %v1351, %v1355
        %v1388 = vadd.f32 %v1287, %v1356
        %v1389 = vadd.f32 %v1288, %v1357
        %v1390 = vadd.f32 %v1289, %v1358
        %v1391 = vadd.f32 %v1290, %v1359
        %v1392 = vadd.f32 %v1291, %v1360
        %v1393 = vadd.f32 %v1292, %v1361
        %v1394 = vadd.f32 %v1293, %v1362
        %v1395 = vadd.f32 %v1294, %v1363
        %v1396 = vadd.f32 %v1295, %v1364
        %v1397 = vadd.f32 %v1296, %v1365
        %v1398 = vadd.f32 %v1297, %v1366
        %v1399 = vadd.f32 %v1298, %v1367
        %v1400 = vadd.f32 %v1299, %v1368
        %v1401 = vadd.f32 %v1300, %v1369
        %v1402 = vadd.f32 %v1301, %v1370
        %v1403 = vadd.f32 %v1302, %v1371
        %v1404 = vadd.f32 %v1303, %v1372
        %v1405 = vadd.f32 %v1304, %v1373
        %v1406 = vadd.f32 %v1305, %v1374
        %v1407 = vadd.f32 %v1306, %v1375
        %v1408 = vadd.f32 %v1307, %v1376
        %v1409 = vadd.f32 %v1308, %v1377
        %v1410 = vadd.f32 %v1309, %v1378
        %v1411 = vadd.f32 %v1310, %v1379
        %v1412 = vadd.f32 %v1311, %v1380
        %v1413 = vadd.f32 %v1312, %v1381
        %v1414 = vadd.f32 %v1313, %v1382
        %v1415 = vadd.f32 %v1314, %v1383
        %v1416 = vadd.f32 %v1315, %v1384
        %v1417 = vadd.f32 %v1316, %v1385
        %v1418 = vadd.f32 %v1317, %v1386
        %v1419 = vadd.f32 %v1318, %v1387
        %v1420 = vld [vmem:[%s1319 + $0x1] sm:$0xff]
        %v1421 = vld [vmem:[%s1319 + $0x9] sm:$0xff]
        %v1422 = vld [vmem:[%s1319 + $0x19] sm:$0xff]
        %v1423 = vld [vmem:[%s1319 + $0x21] sm:$0xff]
        %v1424 = vld [vmem:[%s1319 + $0x31] sm:$0xff]
        %v1425 = vld [vmem:[%s1319 + $0x39] sm:$0xff]
        %v1426 = vld [vmem:[%s1319 + $0x49] sm:$0xff]
        %v1427 = vld [vmem:[%s1319 + $0x51] sm:$0xff]
        %v1428 = vld [vmem:[%s1319 + $0x61] sm:$0xff]
        %v1429 = vld [vmem:[%s1319 + $0x69] sm:$0xff]
        %v1430 = vld [vmem:[%s1319 + $0x79] sm:$0xff]
        %v1431 = vld [vmem:[%s1319 + $0x81] sm:$0xff]
        %v1432 = vld [vmem:[%s1319 + $0x91] sm:$0xff]
        %v1433 = vld [vmem:[%s1319 + $0x99] sm:$0xff]
        %v1434 = vld [vmem:[%s1319 + $0xa9] sm:$0xff]
        %v1435 = vld [vmem:[%s1319 + $0xb1] sm:$0xff]
        %v1436 = vld [vmem:[%s1319 + $0xc1] sm:$0xff]
        %v1437 = vld [vmem:[%s1319 + $0xc9] sm:$0xff]
        %v1438 = vld [vmem:[%s1319 + $0xd9] sm:$0xff]
        %v1439 = vld [vmem:[%s1319 + $0xe1] sm:$0xff]
        %v1440 = vld [vmem:[%s1319 + $0xf1] sm:$0xff]
        %v1441 = vld [vmem:[%s1319 + $0xf9] sm:$0xff]
        %v1442 = vld [vmem:[%s1319 + $0x109] sm:$0xff]
        %v1443 = vld [vmem:[%s1319 + $0x111] sm:$0xff]
        %v1444 = vld [vmem:[%s1319 + $0x121] sm:$0xff]
        %v1445 = vld [vmem:[%s1319 + $0x129] sm:$0xff]
        %v1446 = vld [vmem:[%s1319 + $0x139] sm:$0xff]
        %v1447 = vld [vmem:[%s1319 + $0x141] sm:$0xff]
        %v1448 = vld [vmem:[%s1319 + $0x151] sm:$0xff]
        %v1449 = vld [vmem:[%s1319 + $0x159] sm:$0xff]
        %v1450 = vld [vmem:[%s1319 + $0x169] sm:$0xff]
        %v1451 = vld [vmem:[%s1319 + $0x171] sm:$0xff]
        %v1452 = vlaneseq
        %v1453 = vshrl.u32 %v1452, 7
        %v1454 = vsub.s32 7, %v1453
        %v1455 = vrot.slane %v717, %v1454
        %v1456 = vmul.f32 %v1420, %v1455
        %v1457 = vmul.f32 %v1421, %v1455
        %v1458 = vmul.f32 %v1422, %v1455
        %v1459 = vmul.f32 %v1423, %v1455
        %v1460 = vmul.f32 %v1424, %v1455
        %v1461 = vmul.f32 %v1425, %v1455
        %v1462 = vmul.f32 %v1426, %v1455
        %v1463 = vmul.f32 %v1427, %v1455
        %v1464 = vmul.f32 %v1428, %v1455
        %v1465 = vmul.f32 %v1429, %v1455
        %v1466 = vmul.f32 %v1430, %v1455
        %v1467 = vmul.f32 %v1431, %v1455
        %v1468 = vmul.f32 %v1432, %v1455
        %v1469 = vmul.f32 %v1433, %v1455
        %v1470 = vmul.f32 %v1434, %v1455
        %v1471 = vmul.f32 %v1435, %v1455
        %v1472 = vmul.f32 %v1436, %v1455
        %v1473 = vmul.f32 %v1437, %v1455
        %v1474 = vmul.f32 %v1438, %v1455
        %v1475 = vmul.f32 %v1439, %v1455
        %v1476 = vmul.f32 %v1440, %v1455
        %v1477 = vmul.f32 %v1441, %v1455
        %v1478 = vmul.f32 %v1442, %v1455
        %v1479 = vmul.f32 %v1443, %v1455
        %v1480 = vmul.f32 %v1444, %v1455
        %v1481 = vmul.f32 %v1445, %v1455
        %v1482 = vmul.f32 %v1446, %v1455
        %v1483 = vmul.f32 %v1447, %v1455
        %v1484 = vmul.f32 %v1448, %v1455
        %v1485 = vmul.f32 %v1449, %v1455
        %v1486 = vmul.f32 %v1450, %v1455
        %v1487 = vmul.f32 %v1451, %v1455
        %v1488 = vadd.f32 %v1388, %v1456
        %v1489 = vadd.f32 %v1389, %v1457
        %v1490 = vadd.f32 %v1390, %v1458
        %v1491 = vadd.f32 %v1391, %v1459
        %v1492 = vadd.f32 %v1392, %v1460
        %v1493 = vadd.f32 %v1393, %v1461
        %v1494 = vadd.f32 %v1394, %v1462
        %v1495 = vadd.f32 %v1395, %v1463
        %v1496 = vadd.f32 %v1396, %v1464
        %v1497 = vadd.f32 %v1397, %v1465
        %v1498 = vadd.f32 %v1398, %v1466
        %v1499 = vadd.f32 %v1399, %v1467
        %v1500 = vadd.f32 %v1400, %v1468
        %v1501 = vadd.f32 %v1401, %v1469
        %v1502 = vadd.f32 %v1402, %v1470
        %v1503 = vadd.f32 %v1403, %v1471
        %v1504 = vadd.f32 %v1404, %v1472
        %v1505 = vadd.f32 %v1405, %v1473
        %v1506 = vadd.f32 %v1406, %v1474
        %v1507 = vadd.f32 %v1407, %v1475
        %v1508 = vadd.f32 %v1408, %v1476
        %v1509 = vadd.f32 %v1409, %v1477
        %v1510 = vadd.f32 %v1410, %v1478
        %v1511 = vadd.f32 %v1411, %v1479
        %v1512 = vadd.f32 %v1412, %v1480
        %v1513 = vadd.f32 %v1413, %v1481
        %v1514 = vadd.f32 %v1414, %v1482
        %v1515 = vadd.f32 %v1415, %v1483
        %v1516 = vadd.f32 %v1416, %v1484
        %v1517 = vadd.f32 %v1417, %v1485
        %v1518 = vadd.f32 %v1418, %v1486
        %v1519 = vadd.f32 %v1419, %v1487
        %v1520 = vld [vmem:[%s1319 + $0x2] sm:$0xff]
        %v1521 = vld [vmem:[%s1319 + $0xa] sm:$0xff]
        %v1522 = vld [vmem:[%s1319 + $0x1a] sm:$0xff]
        %v1523 = vld [vmem:[%s1319 + $0x22] sm:$0xff]
        %v1524 = vld [vmem:[%s1319 + $0x32] sm:$0xff]
        %v1525 = vld [vmem:[%s1319 + $0x3a] sm:$0xff]
        %v1526 = vld [vmem:[%s1319 + $0x4a] sm:$0xff]
        %v1527 = vld [vmem:[%s1319 + $0x52] sm:$0xff]
        %v1528 = vld [vmem:[%s1319 + $0x62] sm:$0xff]
        %v1529 = vld [vmem:[%s1319 + $0x6a] sm:$0xff]
        %v1530 = vld [vmem:[%s1319 + $0x7a] sm:$0xff]
        %v1531 = vld [vmem:[%s1319 + $0x82] sm:$0xff]
        %v1532 = vld [vmem:[%s1319 + $0x92] sm:$0xff]
        %v1533 = vld [vmem:[%s1319 + $0x9a] sm:$0xff]
        %v1534 = vld [vmem:[%s1319 + $0xaa] sm:$0xff]
        %v1535 = vld [vmem:[%s1319 + $0xb2] sm:$0xff]
        %v1536 = vld [vmem:[%s1319 + $0xc2] sm:$0xff]
        %v1537 = vld [vmem:[%s1319 + $0xca] sm:$0xff]
        %v1538 = vld [vmem:[%s1319 + $0xda] sm:$0xff]
        %v1539 = vld [vmem:[%s1319 + $0xe2] sm:$0xff]
        %v1540 = vld [vmem:[%s1319 + $0xf2] sm:$0xff]
        %v1541 = vld [vmem:[%s1319 + $0xfa] sm:$0xff]
        %v1542 = vld [vmem:[%s1319 + $0x10a] sm:$0xff]
        %v1543 = vld [vmem:[%s1319 + $0x112] sm:$0xff]
        %v1544 = vld [vmem:[%s1319 + $0x122] sm:$0xff]
        %v1545 = vld [vmem:[%s1319 + $0x12a] sm:$0xff]
        %v1546 = vld [vmem:[%s1319 + $0x13a] sm:$0xff]
        %v1547 = vld [vmem:[%s1319 + $0x142] sm:$0xff]
        %v1548 = vld [vmem:[%s1319 + $0x152] sm:$0xff]
        %v1549 = vld [vmem:[%s1319 + $0x15a] sm:$0xff]
        %v1550 = vld [vmem:[%s1319 + $0x16a] sm:$0xff]
        %v1551 = vld [vmem:[%s1319 + $0x172] sm:$0xff]
        %v1552 = vlaneseq
        %v1553 = vshrl.u32 %v1552, 7
        %v1554 = vsub.s32 0, %v1553
        %v1555 = vrot.slane %v718, %v1554
        %v1556 = vmul.f32 %v1520, %v1555
        %v1557 = vmul.f32 %v1521, %v1555
        %v1558 = vmul.f32 %v1522, %v1555
        %v1559 = vmul.f32 %v1523, %v1555
        %v1560 = vmul.f32 %v1524, %v1555
        %v1561 = vmul.f32 %v1525, %v1555
        %v1562 = vmul.f32 %v1526, %v1555
        %v1563 = vmul.f32 %v1527, %v1555
        %v1564 = vmul.f32 %v1528, %v1555
        %v1565 = vmul.f32 %v1529, %v1555
        %v1566 = vmul.f32 %v1530, %v1555
        %v1567 = vmul.f32 %v1531, %v1555
        %v1568 = vmul.f32 %v1532, %v1555
        %v1569 = vmul.f32 %v1533, %v1555
        %v1570 = vmul.f32 %v1534, %v1555
        %v1571 = vmul.f32 %v1535, %v1555
        %v1572 = vmul.f32 %v1536, %v1555
        %v1573 = vmul.f32 %v1537, %v1555
        %v1574 = vmul.f32 %v1538, %v1555
        %v1575 = vmul.f32 %v1539, %v1555
        %v1576 = vmul.f32 %v1540, %v1555
        %v1577 = vmul.f32 %v1541, %v1555
        %v1578 = vmul.f32 %v1542, %v1555
        %v1579 = vmul.f32 %v1543, %v1555
        %v1580 = vmul.f32 %v1544, %v1555
        %v1581 = vmul.f32 %v1545, %v1555
        %v1582 = vmul.f32 %v1546, %v1555
        %v1583 = vmul.f32 %v1547, %v1555
        %v1584 = vmul.f32 %v1548, %v1555
        %v1585 = vmul.f32 %v1549, %v1555
        %v1586 = vmul.f32 %v1550, %v1555
        %v1587 = vmul.f32 %v1551, %v1555
        %v1588 = vadd.f32 %v1488, %v1556
        %v1589 = vadd.f32 %v1489, %v1557
        %v1590 = vadd.f32 %v1490, %v1558
        %v1591 = vadd.f32 %v1491, %v1559
        %v1592 = vadd.f32 %v1492, %v1560
        %v1593 = vadd.f32 %v1493, %v1561
        %v1594 = vadd.f32 %v1494, %v1562
        %v1595 = vadd.f32 %v1495, %v1563
        %v1596 = vadd.f32 %v1496, %v1564
        %v1597 = vadd.f32 %v1497, %v1565
        %v1598 = vadd.f32 %v1498, %v1566
        %v1599 = vadd.f32 %v1499, %v1567
        %v1600 = vadd.f32 %v1500, %v1568
        %v1601 = vadd.f32 %v1501, %v1569
        %v1602 = vadd.f32 %v1502, %v1570
        %v1603 = vadd.f32 %v1503, %v1571
        %v1604 = vadd.f32 %v1504, %v1572
        %v1605 = vadd.f32 %v1505, %v1573
        %v1606 = vadd.f32 %v1506, %v1574
        %v1607 = vadd.f32 %v1507, %v1575
        %v1608 = vadd.f32 %v1508, %v1576
        %v1609 = vadd.f32 %v1509, %v1577
        %v1610 = vadd.f32 %v1510, %v1578
        %v1611 = vadd.f32 %v1511, %v1579
        %v1612 = vadd.f32 %v1512, %v1580
        %v1613 = vadd.f32 %v1513, %v1581
        %v1614 = vadd.f32 %v1514, %v1582
        %v1615 = vadd.f32 %v1515, %v1583
        %v1616 = vadd.f32 %v1516, %v1584
        %v1617 = vadd.f32 %v1517, %v1585
        %v1618 = vadd.f32 %v1518, %v1586
        %v1619 = vadd.f32 %v1519, %v1587
        %v1620 = vld [vmem:[%s4] sm:$0x1]
        %v1622 = vlaneseq
        %v1623 = vshrl.u32 %v1622, 7
        %v1624 = vsub.s32 0, %v1623
        %v1625 = vrot.slane %v1620, %v1624
        %v1627 = vadd.f32 %v1588, %v1625
        %v1628 = vadd.f32 %v1589, %v1625
        %v1629 = vadd.f32 %v1590, %v1625
        %v1630 = vadd.f32 %v1591, %v1625
        %v1631 = vadd.f32 %v1592, %v1625
        %v1632 = vadd.f32 %v1593, %v1625
        %v1633 = vadd.f32 %v1594, %v1625
        %v1634 = vadd.f32 %v1595, %v1625
        %v1635 = vadd.f32 %v1596, %v1625
        %v1636 = vadd.f32 %v1597, %v1625
        %v1637 = vadd.f32 %v1598, %v1625
        %v1638 = vadd.f32 %v1599, %v1625
        %v1639 = vadd.f32 %v1600, %v1625
        %v1640 = vadd.f32 %v1601, %v1625
        %v1641 = vadd.f32 %v1602, %v1625
        %v1642 = vadd.f32 %v1603, %v1625
        %v1643 = vadd.f32 %v1604, %v1625
        %v1644 = vadd.f32 %v1605, %v1625
        %v1645 = vadd.f32 %v1606, %v1625
        %v1646 = vadd.f32 %v1607, %v1625
        %v1647 = vadd.f32 %v1608, %v1625
        %v1648 = vadd.f32 %v1609, %v1625
        %v1649 = vadd.f32 %v1610, %v1625
        %v1650 = vadd.f32 %v1611, %v1625
        %v1651 = vadd.f32 %v1612, %v1625
        %v1652 = vadd.f32 %v1613, %v1625
        %v1653 = vadd.f32 %v1614, %v1625
        %v1654 = vadd.f32 %v1615, %v1625
        %v1655 = vadd.f32 %v1616, %v1625
        %v1656 = vadd.f32 %v1617, %v1625
        %v1657 = vadd.f32 %v1618, %v1625
        %v1658 = vadd.f32 %v1619, %v1625
        %v1659 = vmax.f32 %v1627, 0.0
        %v1660 = vmax.f32 %v1628, 0.0
        %v1661 = vmax.f32 %v1629, 0.0
        %v1662 = vmax.f32 %v1630, 0.0
        %v1663 = vmax.f32 %v1631, 0.0
        %v1664 = vmax.f32 %v1632, 0.0
        %v1665 = vmax.f32 %v1633, 0.0
        %v1666 = vmax.f32 %v1634, 0.0
        %v1667 = vmax.f32 %v1635, 0.0
        %v1668 = vmax.f32 %v1636, 0.0
        %v1669 = vmax.f32 %v1637, 0.0
        %v1670 = vmax.f32 %v1638, 0.0
        %v1671 = vmax.f32 %v1639, 0.0
        %v1672 = vmax.f32 %v1640, 0.0
        %v1673 = vmax.f32 %v1641, 0.0
        %v1674 = vmax.f32 %v1642, 0.0
        %v1675 = vmax.f32 %v1643, 0.0
        %v1676 = vmax.f32 %v1644, 0.0
        %v1677 = vmax.f32 %v1645, 0.0
        %v1678 = vmax.f32 %v1646, 0.0
        %v1679 = vmax.f32 %v1647, 0.0
        %v1680 = vmax.f32 %v1648, 0.0
        %v1681 = vmax.f32 %v1649, 0.0
        %v1682 = vmax.f32 %v1650, 0.0
        %v1683 = vmax.f32 %v1651, 0.0
        %v1684 = vmax.f32 %v1652, 0.0
        %v1685 = vmax.f32 %v1653, 0.0
        %v1686 = vmax.f32 %v1654, 0.0
        %v1687 = vmax.f32 %v1655, 0.0
        %v1688 = vmax.f32 %v1656, 0.0
        %v1689 = vmax.f32 %v1657, 0.0
        %v1690 = vmax.f32 %v1658, 0.0
        %v1691 = vpack.c.bf16 %v1660, %v1659
        %v1692 = vpack.c.bf16 %v1662, %v1661
        %v1693 = vpack.c.bf16 %v1664, %v1663
        %v1694 = vpack.c.bf16 %v1666, %v1665
        %v1695 = vpack.c.bf16 %v1668, %v1667
        %v1696 = vpack.c.bf16 %v1670, %v1669
        %v1697 = vpack.c.bf16 %v1672, %v1671
        %v1698 = vpack.c.bf16 %v1674, %v1673
        %v1699 = vpack.c.bf16 %v1676, %v1675
        %v1700 = vpack.c.bf16 %v1678, %v1677
        %v1701 = vpack.c.bf16 %v1680, %v1679
        %v1702 = vpack.c.bf16 %v1682, %v1681
        %v1703 = vpack.c.bf16 %v1684, %v1683
        %v1704 = vpack.c.bf16 %v1686, %v1685
        %v1705 = vpack.c.bf16 %v1688, %v1687
        %v1706 = vpack.c.bf16 %v1690, %v1689
        %v1707 = vld [vmem:[%s5] sm:$0xf]
        %v1708 = vld [vmem:[%s5 + $0x4] sm:$0xf]
        %v1709 = vld [vmem:[%s5 + $0x8] sm:$0xf]
        %v1710 = vld [vmem:[%s5 + $0xc] sm:$0xf]
        %v1711 = vld [vmem:[%s5 + $0x10] sm:$0xf]
        %v1712 = vld [vmem:[%s5 + $0x14] sm:$0xf]
        %v1713 = vld [vmem:[%s6] sm:$0x1]
        %v1715 = vlaneseq
        %v1716 = vshrl.u32 %v1715, 7
        %v1717 = vsub.s32 0, %v1716
        %v1718 = vrot.slane %v1713, %v1717
        %v1726 = vunpack.c.l.b16 %v1707
        %v1727 = vunpack.c.l.b16 %v1708
        %v1728 = vunpack.c.l.b16 %v1709
        %v1729 = vunpack.c.l.b16 %v1710
        %v1730 = vunpack.c.l.b16 %v1711
        %v1731 = vunpack.c.l.b16 %v1712
        %v1732 = vpack.c.b16 %v1727, %v1726
        %v1733 = vpack.c.b16 %v1729, %v1728
        %v1734 = vpack.c.b16 %v1731, %v1730
        %v1739 = vsel %vm642, %v1691, 0
        %v1742 = vsel %vm642, %v1692, 0
        %v1745 = vsel %vm642, %v1693, 0
        %v1748 = vsel %vm642, %v1694, 0
        %v1751 = vsel %vm642, %v1695, 0
        %v1754 = vsel %vm642, %v1696, 0
        %v1757 = vsel %vm642, %v1697, 0
        %v1760 = vsel %vm642, %v1698, 0
        %v1763 = vsel %vm642, %v1699, 0
        %v1766 = vsel %vm642, %v1700, 0
        %v1769 = vsel %vm642, %v1701, 0
        %v1772 = vsel %vm642, %v1702, 0
        %v1775 = vsel %vm642, %v1703, 0
        %v1778 = vsel %vm642, %v1704, 0
        %v1781 = vsel %vm642, %v1705, 0
        %v1784 = vsel %vm642, %v1706, 0
        %1786 = vmatprep.subr.bf16.mxu0 0
        %1787 = vmatpush1.bf16.msra.mxu0 %v1732
        %1788 = vmatprep.subr.bf16.mxu0 0
        %1789 = vmatpush1.bf16.msra.mxu0 %v1733
        %1790 = vmatprep.subr.bf16.mxu0 0
        %1791 = vmatpush1.bf16.msra.mxu0 %v1734
        %1792 = vmatprep.subr.bf16.mxu0 0
        %1793 = vmatpush1.bf16.msra.mxu0 0
        %1794 = vmatprep.subr.bf16.mxu0 0
        %1795 = vmatpush1.bf16.msra.mxu0 0
        %1796 = vmatprep.subr.bf16.mxu0 0
        %1797 = vmatpush1.bf16.msra.mxu0 0
        %1798 = vmatprep.subr.bf16.mxu0 0
        %1799 = vmatpush1.bf16.msra.mxu0 0
        %1800 = vmatprep.subr.bf16.mxu0 0
        %1801 = vmatpush1.bf16.msra.mxu0 0
        %1802 = vmatprep.subr.bf16.mxu0 0
        %1803 = vmatpush1.bf16.msra.mxu0 0
        %1804 = vmatprep.subr.bf16.mxu0 0
        %1805 = vmatpush1.bf16.msra.mxu0 0
        %1806 = vmatprep.subr.bf16.mxu0 0
        %1807 = vmatpush1.bf16.msra.mxu0 0
        %1808 = vmatprep.subr.bf16.mxu0 0
        %1809 = vmatpush1.bf16.msra.mxu0 0
        %1810 = vmatprep.subr.bf16.mxu0 0
        %1811 = vmatpush1.bf16.msra.mxu0 0
        %1812 = vmatprep.subr.bf16.mxu0 0
        %1813 = vmatpush1.bf16.msra.mxu0 0
        %1814 = vmatprep.subr.bf16.mxu0 0
        %1815 = vmatpush1.bf16.msra.mxu0 0
        %1816 = vmatprep.subr.bf16.mxu0 0
        %1817 = vmatpush1.bf16.msra.mxu0 0
        %1818 = vmatprep.mubr.bf16.mxu0 0
        %1819 = vmatmul.mubr.bf16.gmra.mrb[0].mxu0 %v1739
        %v1820 = vpop.f32.mrb[0].mxu0
        %v1821 = vadd.f32 %v1718, %v1820
        %v1822 = vpop.f32.mrb[0].mxu0
        %v1823 = vpop.f32.mrb[0].mxu0
        %v1824 = vadd.f32 %v1718, %v1823
        %v1825 = vpop.f32.mrb[0].mxu0
        %1826 = vmatprep.mubr.bf16.mxu0 0
        %1827 = vmatmul.mubr.bf16.gmra.mrb[0].mxu0 %v1742
        %v1828 = vpop.f32.mrb[0].mxu0
        %v1829 = vadd.f32 %v1718, %v1828
        %v1830 = vpop.f32.mrb[0].mxu0
        %v1831 = vpop.f32.mrb[0].mxu0
        %v1832 = vadd.f32 %v1718, %v1831
        %v1833 = vpop.f32.mrb[0].mxu0
        %1834 = vmatprep.mubr.bf16.mxu0 0
        %1835 = vmatmul.mubr.bf16.gmra.mrb[0].mxu0 %v1745
        %v1836 = vpop.f32.mrb[0].mxu0
        %v1837 = vadd.f32 %v1718, %v1836
        %v1838 = vpop.f32.mrb[0].mxu0
        %v1839 = vpop.f32.mrb[0].mxu0
        %v1840 = vadd.f32 %v1718, %v1839
        %v1841 = vpop.f32.mrb[0].mxu0
        %1842 = vmatprep.mubr.bf16.mxu0 0
        %1843 = vmatmul.mubr.bf16.gmra.mrb[0].mxu0 %v1748
        %v1844 = vpop.f32.mrb[0].mxu0
        %v1845 = vadd.f32 %v1718, %v1844
        %v1846 = vpop.f32.mrb[0].mxu0
        %v1847 = vpop.f32.mrb[0].mxu0
        %v1848 = vadd.f32 %v1718, %v1847
        %v1849 = vpop.f32.mrb[0].mxu0
        %1850 = vmatprep.mubr.bf16.mxu0 0
        %1851 = vmatmul.mubr.bf16.gmra.mrb[0].mxu0 %v1751
        %v1852 = vpop.f32.mrb[0].mxu0
        %v1853 = vadd.f32 %v1718, %v1852
        %v1854 = vpop.f32.mrb[0].mxu0
        %v1855 = vpop.f32.mrb[0].mxu0
        %v1856 = vadd.f32 %v1718, %v1855
        %v1857 = vpop.f32.mrb[0].mxu0
        %1858 = vmatprep.mubr.bf16.mxu0 0
        %1859 = vmatmul.mubr.bf16.gmra.mrb[0].mxu0 %v1754
        %v1860 = vpop.f32.mrb[0].mxu0
        %v1861 = vadd.f32 %v1718, %v1860
        %v1862 = vpop.f32.mrb[0].mxu0
        %v1863 = vpop.f32.mrb[0].mxu0
        %v1864 = vadd.f32 %v1718, %v1863
        %v1865 = vpop.f32.mrb[0].mxu0
        %1866 = vmatprep.mubr.bf16.mxu0 0
        %1867 = vmatmul.mubr.bf16.gmra.mrb[0].mxu0 %v1757
        %v1868 = vpop.f32.mrb[0].mxu0
        %v1869 = vadd.f32 %v1718, %v1868
        %v1870 = vpop.f32.mrb[0].mxu0
        %v1871 = vpop.f32.mrb[0].mxu0
        %v1872 = vadd.f32 %v1718, %v1871
        %v1873 = vpop.f32.mrb[0].mxu0
        %1874 = vmatprep.mubr.bf16.mxu0 0
        %1875 = vmatmul.mubr.bf16.gmra.mrb[0].mxu0 %v1760
        %v1876 = vpop.f32.mrb[0].mxu0
        %v1877 = vadd.f32 %v1718, %v1876
        %v1878 = vpop.f32.mrb[0].mxu0
        %v1879 = vpop.f32.mrb[0].mxu0
        %v1880 = vadd.f32 %v1718, %v1879
        %v1881 = vpop.f32.mrb[0].mxu0
        %1882 = vmatprep.mubr.bf16.mxu0 0
        %1883 = vmatmul.mubr.bf16.gmra.mrb[0].mxu0 %v1763
        %v1884 = vpop.f32.mrb[0].mxu0
        %v1885 = vadd.f32 %v1718, %v1884
        %v1886 = vpop.f32.mrb[0].mxu0
        %v1887 = vpop.f32.mrb[0].mxu0
        %v1888 = vadd.f32 %v1718, %v1887
        %v1889 = vpop.f32.mrb[0].mxu0
        %1890 = vmatprep.mubr.bf16.mxu0 0
        %1891 = vmatmul.mubr.bf16.gmra.mrb[0].mxu0 %v1766
        %v1892 = vpop.f32.mrb[0].mxu0
        %v1893 = vadd.f32 %v1718, %v1892
        %v1894 = vpop.f32.mrb[0].mxu0
        %v1895 = vpop.f32.mrb[0].mxu0
        %v1896 = vadd.f32 %v1718, %v1895
        %v1897 = vpop.f32.mrb[0].mxu0
        %1898 = vmatprep.mubr.bf16.mxu0 0
        %1899 = vmatmul.mubr.bf16.gmra.mrb[0].mxu0 %v1769
        %v1900 = vpop.f32.mrb[0].mxu0
        %v1901 = vadd.f32 %v1718, %v1900
        %v1902 = vpop.f32.mrb[0].mxu0
        %v1903 = vpop.f32.mrb[0].mxu0
        %v1904 = vadd.f32 %v1718, %v1903
        %v1905 = vpop.f32.mrb[0].mxu0
        %1906 = vmatprep.mubr.bf16.mxu0 0
        %1907 = vmatmul.mubr.bf16.gmra.mrb[0].mxu0 %v1772
        %v1908 = vpop.f32.mrb[0].mxu0
        %v1909 = vadd.f32 %v1718, %v1908
        %v1910 = vpop.f32.mrb[0].mxu0
        %v1911 = vpop.f32.mrb[0].mxu0
        %v1912 = vadd.f32 %v1718, %v1911
        %v1913 = vpop.f32.mrb[0].mxu0
        %1914 = vmatprep.mubr.bf16.mxu0 0
        %1915 = vmatmul.mubr.bf16.gmra.mrb[0].mxu0 %v1775
        %v1916 = vpop.f32.mrb[0].mxu0
        %v1917 = vadd.f32 %v1718, %v1916
        %v1918 = vpop.f32.mrb[0].mxu0
        %v1919 = vpop.f32.mrb[0].mxu0
        %v1920 = vadd.f32 %v1718, %v1919
        %v1921 = vpop.f32.mrb[0].mxu0
        %1922 = vmatprep.mubr.bf16.mxu0 0
        %1923 = vmatmul.mubr.bf16.gmra.mrb[0].mxu0 %v1778
        %v1924 = vpop.f32.mrb[0].mxu0
        %v1925 = vadd.f32 %v1718, %v1924
        %v1926 = vpop.f32.mrb[0].mxu0
        %v1927 = vpop.f32.mrb[0].mxu0
        %v1928 = vadd.f32 %v1718, %v1927
        %v1929 = vpop.f32.mrb[0].mxu0
        %1930 = vmatprep.mubr.bf16.mxu0 0
        %1931 = vmatmul.mubr.bf16.gmra.mrb[0].mxu0 %v1781
        %v1932 = vpop.f32.mrb[0].mxu0
        %v1933 = vadd.f32 %v1718, %v1932
        %v1934 = vpop.f32.mrb[0].mxu0
        %v1935 = vpop.f32.mrb[0].mxu0
        %v1936 = vadd.f32 %v1718, %v1935
        %v1937 = vpop.f32.mrb[0].mxu0
        %1938 = vmatprep.mubr.bf16.mxu0 0
        %1939 = vmatmul.mubr.bf16.gmra.mrb[0].mxu0 %v1784
        %v1940 = vpop.f32.mrb[0].mxu0
        %v1941 = vadd.f32 %v1718, %v1940
        %v1942 = vpop.f32.mrb[0].mxu0
        %v1943 = vpop.f32.mrb[0].mxu0
        %v1944 = vadd.f32 %v1718, %v1943
        %v1945 = vpop.f32.mrb[0].mxu0
        %1946 = vdwg.mxu0
        %1979 = vrot.lane.b32.xlu0 %v329, 48
        %v1980 = vpop.permute.xlu0 %1979
        %1981 = vrot.lane.b32.xlu0 %v330, 48
        %v1982 = vpop.permute.xlu0 %1981
        %1983 = vrot.lane.b32.xlu0 %v331, 48
        %v1984 = vpop.permute.xlu0 %1983
        %1985 = vrot.lane.b32.xlu0 %v332, 48
        %v1986 = vpop.permute.xlu0 %1985
        %1987 = vrot.lane.b32.xlu0 %v333, 48
        %v1988 = vpop.permute.xlu0 %1987
        %1989 = vrot.lane.b32.xlu0 %v334, 48
        %v1990 = vpop.permute.xlu0 %1989
        %1991 = vrot.lane.b32.xlu0 %v335, 48
        %v1992 = vpop.permute.xlu0 %1991
        %1993 = vrot.lane.b32.xlu0 %v336, 48
        %v1994 = vpop.permute.xlu0 %1993
        %1995 = vrot.lane.b32.xlu0 %v337, 48
        %v1996 = vpop.permute.xlu0 %1995
        %1997 = vrot.lane.b32.xlu0 %v338, 48
        %v1998 = vpop.permute.xlu0 %1997
        %1999 = vrot.lane.b32.xlu0 %v339, 48
        %v2000 = vpop.permute.xlu0 %1999
        %2001 = vrot.lane.b32.xlu0 %v340, 48
        %v2002 = vpop.permute.xlu0 %2001
        %2003 = vrot.lane.b32.xlu0 %v341, 48
        %v2004 = vpop.permute.xlu0 %2003
        %2005 = vrot.lane.b32.xlu0 %v342, 48
        %v2006 = vpop.permute.xlu0 %2005
        %2007 = vrot.lane.b32.xlu0 %v343, 48
        %v2008 = vpop.permute.xlu0 %2007
        %2009 = vrot.lane.b32.xlu0 %v344, 48
        %v2010 = vpop.permute.xlu0 %2009
        %2011 = vrot.lane.b32.xlu0 %v345, 48
        %v2012 = vpop.permute.xlu0 %2011
        %2013 = vrot.lane.b32.xlu0 %v346, 48
        %v2014 = vpop.permute.xlu0 %2013
        %2015 = vrot.lane.b32.xlu0 %v347, 48
        %v2016 = vpop.permute.xlu0 %2015
        %2017 = vrot.lane.b32.xlu0 %v348, 48
        %v2018 = vpop.permute.xlu0 %2017
        %2019 = vrot.lane.b32.xlu0 %v349, 48
        %v2020 = vpop.permute.xlu0 %2019
        %2021 = vrot.lane.b32.xlu0 %v350, 48
        %v2022 = vpop.permute.xlu0 %2021
        %2023 = vrot.lane.b32.xlu0 %v351, 48
        %v2024 = vpop.permute.xlu0 %2023
        %2025 = vrot.lane.b32.xlu0 %v352, 48
        %v2026 = vpop.permute.xlu0 %2025
        %2027 = vrot.lane.b32.xlu0 %v353, 48
        %v2028 = vpop.permute.xlu0 %2027
        %2029 = vrot.lane.b32.xlu0 %v354, 48
        %v2030 = vpop.permute.xlu0 %2029
        %2031 = vrot.lane.b32.xlu0 %v355, 48
        %v2032 = vpop.permute.xlu0 %2031
        %2033 = vrot.lane.b32.xlu0 %v356, 48
        %v2034 = vpop.permute.xlu0 %2033
        %2035 = vrot.lane.b32.xlu0 %v357, 48
        %v2036 = vpop.permute.xlu0 %2035
        %2037 = vrot.lane.b32.xlu0 %v358, 48
        %v2038 = vpop.permute.xlu0 %2037
        %2039 = vrot.lane.b32.xlu0 %v359, 48
        %v2040 = vpop.permute.xlu0 %2039
        %2041 = vrot.lane.b32.xlu0 %v360, 48
        %v2042 = vpop.permute.xlu0 %2041
        %vm2075 = vcmask 523264
        %v2076 = vsel %vm2075, 0.0, %v1980
        %v2077 = vsel %vm2075, 0.0, %v1982
        %v2078 = vsel %vm2075, 0.0, %v1984
        %v2079 = vsel %vm2075, 0.0, %v1986
        %v2080 = vsel %vm2075, 0.0, %v1988
        %v2081 = vsel %vm2075, 0.0, %v1990
        %v2082 = vsel %vm2075, 0.0, %v1992
        %v2083 = vsel %vm2075, 0.0, %v1994
        %v2084 = vsel %vm2075, 0.0, %v1996
        %v2085 = vsel %vm2075, 0.0, %v1998
        %v2086 = vsel %vm2075, 0.0, %v2000
        %v2087 = vsel %vm2075, 0.0, %v2002
        %v2088 = vsel %vm2075, 0.0, %v2004
        %v2089 = vsel %vm2075, 0.0, %v2006
        %v2090 = vsel %vm2075, 0.0, %v2008
        %v2091 = vsel %vm2075, 0.0, %v2010
        %v2092 = vsel %vm2075, 0.0, %v2012
        %v2093 = vsel %vm2075, 0.0, %v2014
        %v2094 = vsel %vm2075, 0.0, %v2016
        %v2095 = vsel %vm2075, 0.0, %v2018
        %v2096 = vsel %vm2075, 0.0, %v2020
        %v2097 = vsel %vm2075, 0.0, %v2022
        %v2098 = vsel %vm2075, 0.0, %v2024
        %v2099 = vsel %vm2075, 0.0, %v2026
        %v2100 = vsel %vm2075, 0.0, %v2028
        %v2101 = vsel %vm2075, 0.0, %v2030
        %v2102 = vsel %vm2075, 0.0, %v2032
        %v2103 = vsel %vm2075, 0.0, %v2034
        %v2104 = vsel %vm2075, 0.0, %v2036
        %v2105 = vsel %vm2075, 0.0, %v2038
        %v2106 = vsel %vm2075, 0.0, %v2040
        %v2107 = vsel %vm2075, 0.0, %v2042
        %vm2108 = vcmask 556032
        %v2109 = vsel %vm2108, %v2076, 0.0
        %v2110 = vsel %vm2108, %v2077, 0.0
        %v2111 = vsel %vm2108, %v2078, 0.0
        %v2112 = vsel %vm2108, %v2079, 0.0
        %v2113 = vsel %vm2108, %v2080, 0.0
        %v2114 = vsel %vm2108, %v2081, 0.0
        %v2115 = vsel %vm2108, %v2082, 0.0
        %v2116 = vsel %vm2108, %v2083, 0.0
        %v2117 = vsel %vm2108, %v2084, 0.0
        %v2118 = vsel %vm2108, %v2085, 0.0
        %v2119 = vsel %vm2108, %v2086, 0.0
        %v2120 = vsel %vm2108, %v2087, 0.0
        %v2121 = vsel %vm2108, %v2088, 0.0
        %v2122 = vsel %vm2108, %v2089, 0.0
        %v2123 = vsel %vm2108, %v2090, 0.0
        %v2124 = vsel %vm2108, %v2091, 0.0
        %v2125 = vsel %vm2108, %v2092, 0.0
        %v2126 = vsel %vm2108, %v2093, 0.0
        %v2127 = vsel %vm2108, %v2094, 0.0
        %v2128 = vsel %vm2108, %v2095, 0.0
        %v2129 = vsel %vm2108, %v2096, 0.0
        %v2130 = vsel %vm2108, %v2097, 0.0
        %v2131 = vsel %vm2108, %v2098, 0.0
        %v2132 = vsel %vm2108, %v2099, 0.0
        %v2133 = vsel %vm2108, %v2100, 0.0
        %v2134 = vsel %vm2108, %v2101, 0.0
        %v2135 = vsel %vm2108, %v2102, 0.0
        %v2136 = vsel %vm2108, %v2103, 0.0
        %v2137 = vsel %vm2108, %v2104, 0.0
        %v2138 = vsel %vm2108, %v2105, 0.0
        %v2139 = vsel %vm2108, %v2106, 0.0
        %v2140 = vsel %vm2108, %v2107, 0.0
        %v2141 = vadd.f32 %v1821, %v2109
        %v2142 = vadd.f32 %v1824, %v2110
        %v2143 = vadd.f32 %v1829, %v2111
        %v2144 = vadd.f32 %v1832, %v2112
        %v2145 = vadd.f32 %v1837, %v2113
        %v2146 = vadd.f32 %v1840, %v2114
        %v2147 = vadd.f32 %v1845, %v2115
        %v2148 = vadd.f32 %v1848, %v2116
        %v2149 = vadd.f32 %v1853, %v2117
        %v2150 = vadd.f32 %v1856, %v2118
        %v2151 = vadd.f32 %v1861, %v2119
        %v2152 = vadd.f32 %v1864, %v2120
        %v2153 = vadd.f32 %v1869, %v2121
        %v2154 = vadd.f32 %v1872, %v2122
        %v2155 = vadd.f32 %v1877, %v2123
        %v2156 = vadd.f32 %v1880, %v2124
        %v2157 = vadd.f32 %v1885, %v2125
        %v2158 = vadd.f32 %v1888, %v2126
        %v2159 = vadd.f32 %v1893, %v2127
        %v2160 = vadd.f32 %v1896, %v2128
        %v2161 = vadd.f32 %v1901, %v2129
        %v2162 = vadd.f32 %v1904, %v2130
        %v2163 = vadd.f32 %v1909, %v2131
        %v2164 = vadd.f32 %v1912, %v2132
        %v2165 = vadd.f32 %v1917, %v2133
        %v2166 = vadd.f32 %v1920, %v2134
        %v2167 = vadd.f32 %v1925, %v2135
        %v2168 = vadd.f32 %v1928, %v2136
        %v2169 = vadd.f32 %v1933, %v2137
        %v2170 = vadd.f32 %v1936, %v2138
        %v2171 = vadd.f32 %v1941, %v2139
        %v2172 = vadd.f32 %v1944, %v2140
        %2173 = vxpose.xlu0.b32.start [1/16] %v2141, 128
        %2174 = vxpose.xlu0.b32.cont [2/16] %v2142, 128
        %2175 = vxpose.xlu0.b32.cont [3/16] %v2143, 128
        %2176 = vxpose.xlu0.b32.cont [4/16] %v2144, 128
        %2177 = vxpose.xlu0.b32.cont [5/16] %v2145, 128
        %2178 = vxpose.xlu0.b32.cont [6/16] %v2146, 128
        %2179 = vxpose.xlu0.b32.cont [7/16] %v2147, 128
        %2180 = vxpose.xlu0.b32.cont [8/16] %v2148, 128
        %2181 = vxpose.xlu0.b32.cont [9/16] %v2149, 128
        %2182 = vxpose.xlu0.b32.cont [10/16] %v2150, 128
        %2183 = vxpose.xlu0.b32.cont [11/16] %v2151, 128
        %2184 = vxpose.xlu0.b32.cont [12/16] %v2152, 128
        %2185 = vxpose.xlu0.b32.cont [13/16] %v2153, 128
        %2186 = vxpose.xlu0.b32.cont [14/16] %v2154, 128
        %2187 = vxpose.xlu0.b32.cont [15/16] %v2155, 128
        %2188 = vxpose.xlu0.b32.end [16/16] %v2156, 128
        %v2189 = vpop.trf.xlu0
        %v2190 = vpop.trf.xlu0
        %v2191 = vpop.trf.xlu0
        %v2192 = vpop.trf.xlu0
        %v2193 = vpop.trf.xlu0
        %v2194 = vpop.trf.xlu0
        %v2195 = vpop.trf.xlu0
        %v2196 = vpop.trf.xlu0
        %v2197 = vpop.trf.xlu0
        %v2198 = vpop.trf.xlu0
        %v2199 = vpop.trf.xlu0
        %v2200 = vpop.trf.xlu0
        %v2201 = vpop.trf.xlu0
        %v2202 = vpop.trf.xlu0
        %v2203 = vpop.trf.xlu0
        %v2204 = vpop.trf.xlu0
        %2205 = vxpose.xlu0.b32.start [1/16] %v2157, 128
        %2206 = vxpose.xlu0.b32.cont [2/16] %v2158, 128
        %2207 = vxpose.xlu0.b32.cont [3/16] %v2159, 128
        %2208 = vxpose.xlu0.b32.cont [4/16] %v2160, 128
        %2209 = vxpose.xlu0.b32.cont [5/16] %v2161, 128
        %2210 = vxpose.xlu0.b32.cont [6/16] %v2162, 128
        %2211 = vxpose.xlu0.b32.cont [7/16] %v2163, 128
        %2212 = vxpose.xlu0.b32.cont [8/16] %v2164, 128
        %2213 = vxpose.xlu0.b32.cont [9/16] %v2165, 128
        %2214 = vxpose.xlu0.b32.cont [10/16] %v2166, 128
        %2215 = vxpose.xlu0.b32.cont [11/16] %v2167, 128
        %2216 = vxpose.xlu0.b32.cont [12/16] %v2168, 128
        %2217 = vxpose.xlu0.b32.cont [13/16] %v2169, 128
        %2218 = vxpose.xlu0.b32.cont [14/16] %v2170, 128
        %2219 = vxpose.xlu0.b32.cont [15/16] %v2171, 128
        %2220 = vxpose.xlu0.b32.end [16/16] %v2172, 128
        %v2221 = vpop.trf.xlu0
        %v2222 = vpop.trf.xlu0
        %v2223 = vpop.trf.xlu0
        %v2224 = vpop.trf.xlu0
        %v2225 = vpop.trf.xlu0
        %v2226 = vpop.trf.xlu0
        %v2227 = vpop.trf.xlu0
        %v2228 = vpop.trf.xlu0
        %v2229 = vpop.trf.xlu0
        %v2230 = vpop.trf.xlu0
        %v2231 = vpop.trf.xlu0
        %v2232 = vpop.trf.xlu0
        %v2233 = vpop.trf.xlu0
        %v2234 = vpop.trf.xlu0
        %v2235 = vpop.trf.xlu0
        %v2236 = vpop.trf.xlu0
        %2237 = vst [vmem:[%s327] sm:$0xff] %v2189
        %2238 = vst [vmem:[%s327 + $0x8] sm:$0xff] %v2221
        %2239 = vst [vmem:[%s327 + $0x10] sm:$0xff] %v2190
        %2240 = vst [vmem:[%s327 + $0x18] sm:$0xff] %v2222
        %2241 = vst [vmem:[%s327 + $0x20] sm:$0xff] %v2191
        %2242 = vst [vmem:[%s327 + $0x28] sm:$0xff] %v2223
        %2243 = vst [vmem:[%s327 + $0x30] sm:$0xff] %v2192
        %2244 = vst [vmem:[%s327 + $0x38] sm:$0xff] %v2224
        %2245 = vst [vmem:[%s327 + $0x40] sm:$0xff] %v2193
        %2246 = vst [vmem:[%s327 + $0x48] sm:$0xff] %v2225
        %2247 = vst [vmem:[%s327 + $0x50] sm:$0xff] %v2194
        %2248 = vst [vmem:[%s327 + $0x58] sm:$0xff] %v2226
        %2249 = vst [vmem:[%s327 + $0x60] sm:$0xff] %v2195
        %2250 = vst [vmem:[%s327 + $0x68] sm:$0xff] %v2227
        %2251 = vst [vmem:[%s327 + $0x70] sm:$0xff] %v2196
        %2252 = vst [vmem:[%s327 + $0x78] sm:$0xff] %v2228
        %2253 = vst [vmem:[%s327 + $0x80] sm:$0xff] %v2197
        %2254 = vst [vmem:[%s327 + $0x88] sm:$0xff] %v2229
        %p2255 = scmp.lt.s32.totalorder %s22, 1
        %s2256 = scalar_select %p2255, %s22, 1
        %s2257 = smul.addr %s2256, 18
        %s2258 = smul.addr %s2257, 8
        %s2259 = scalar_lea.vmem %s7, %s2258
        // Predicated region
        $region61: #{_lambda_.1} parent=47 // pred_check
          %p2260 = pneg %p192
        $region62: #{_lambda_.1} parent=47 // pred_check_branch
          %2262 = sbr.rel (%p2260) target = $region64
        $region63: #{_lambda_.1} parent=47 // pred_region
          _
        $region64: #{_lambda_.1} parent=47 // pred_fallthru
          _
      $region48: #{_lambda_.1} parent=5 // pred_fallthru
        _
      %p2263 = scmp.le.s32.totalorder 2, %s17
      // Predicated region
      $region65: #{_lambda_.1} parent=5 // pred_check
        %p2264 = pneg %p2263
      $region66: #{_lambda_.1} parent=5 // pred_check_branch
        %2266 = sbr.rel (%p2264) target = $region68
      $region67: #{_lambda_.1} parent=5 // pred_region
        %s2267 = ssub.s32 %s17, 2
        // Predicated region
        $region69: #{_lambda_.1} parent=67 // pred_check
          %p2268 = pneg %p198
        $region70: #{_lambda_.1} parent=67 // pred_check_branch
          %2270 = sbr.rel (%p2268) target = $region72
        $region71: #{_lambda_.1} parent=67 // pred_region
          %p2271 = scmp.lt.s32.totalorder %s23, 1
          %s2272 = scalar_select %p2271, %s23, 1
          %s2273 = smul.addr %s2272, 18
          %s2274 = smul.addr %s2273, 8
          %s2275 = scalar_lea.vmem %s7, %s2274
        $region72: #{_lambda_.1} parent=67 // pred_fallthru
          _
      $region68: #{_lambda_.1} parent=5 // pred_fallthru
        _
    $region6: #{_lambda_.1} parent=1 // loop_footer
      %s21 = sadd.s32 1, %s17
    $region7: #{_lambda_.1} parent=1 // loop_footer_branch
      %16 = sbr.rel target = $region3
    $region8: #{_lambda_.1} parent=1 // loop_exit
      _
    %2276 = vsyncpa [#allocation4], 1
    %s2277 = scalar_lea.sflag [#allocation4], 1
    %2278 = vsyncpa %s2277, 1
    %2279 = vsyncpa [#allocation6], 1

</llo_original>
